<compile_context>
chip_gen: v7x
topology: tpu7x:2x2x1
jax: 0.10.0
libtpu: 0.0.40
codegen_flags: <defaults>
</compile_context>

<pallas_src>
import functools

import numpy as np
import jax
import jax.numpy as jnp
from jax.experimental import pallas as pl
from jax.experimental.pallas import tpu as pltpu

VTH = 1.0      # spiking threshold (soft reset)
MU = 0.0       # PopEncoder mu    (np.zeros(in_size))
SIGMA = 2.0    # PopEncoder sigma (2.0 * np.ones(in_size))


# ----------------------------------------------------------------------------
# Kernel 1: population-encoder IF recurrence (Gaussian current precomputed)
# ----------------------------------------------------------------------------
def _pop_encode_kernel(a_ref, s_ref, *, nt):
    a = a_ref[...]                       # [1, BD] f32 constant input current
    v = jnp.zeros_like(a)
    rows = []
    for _ in range(nt):                  # nt is small & static -> fully unrolled
        v = v + a
        spk = (v >= VTH).astype(jnp.float32)
        rows.append(spk)
        v = v - spk * VTH
    # single lane-dense store of the whole [nt, BD] spike block
    s_ref[...] = jnp.concatenate(rows, axis=0).astype(s_ref.dtype)


def pop_encode(a, nt):
    """a: [1, BD] f32 Gaussian current -> spikes [nt, BD] bf16 (0/1 exact)."""
    BD = a.shape[1]
    return pl.pallas_call(
        functools.partial(_pop_encode_kernel, nt=nt),
        out_shape=jax.ShapeDtypeStruct((nt, BD), jnp.bfloat16),
        grid=(1,),
        in_specs=[pl.BlockSpec((1, BD), lambda i: (0, 0))],
        out_specs=pl.BlockSpec((nt, BD), lambda i: (0, 0)),
    )(a)


# ----------------------------------------------------------------------------
# Kernel 2: fused ConvTranspose2d(kernel==stride) matmul + bias + IF recurrence
# ----------------------------------------------------------------------------
def _deconv_if_kernel(x_ref, w_ref, b_ref, s_ref, v_ref):
    # x_ref: (1, tm, C_in) bf16 input spikes for (timestep t, row tile i)
    # w_ref: (C_in, N)     bf16 weight (N = C_out*k*k), constant index -> resident
    # b_ref: (1, N)        f32 bias (already repeated over (kh, kw))
    # s_ref: (1, tm, N)    bf16 output spikes
    # v_ref: (tm, N)       f32 membrane potential, persists across the time axis
    @pl.when(pl.program_id(1) == 0)
    def _():
        v_ref[...] = jnp.zeros_like(v_ref)
    cur = jnp.dot(x_ref[0], w_ref[...],
                  preferred_element_type=jnp.float32) + b_ref[...]
    v = v_ref[...] + cur                                   # IF math stays f32
    spk = (v >= VTH).astype(jnp.float32)
    v_ref[...] = v - spk * VTH                             # soft reset
    s_ref[0] = spk.astype(s_ref.dtype)


def deconv_if_layer(x, wmat, bias2d, *, tm_max=512):
    """x: [nt, M, C_in] bf16; wmat: [C_in, N] bf16; bias2d: [1, N] f32
       -> spikes [nt, M, N] bf16 (matmul-output layout; IF is elementwise)."""
    nt, M, C_in = x.shape
    N = wmat.shape[1]
    tm = M if M <= tm_max else tm_max            # big row tiles (v6e/v7x MXU)
    grid = (pl.cdiv(M, tm), nt)                  # time trailing & sequential
    return pl.pallas_call(
        _deconv_if_kernel,
        out_shape=jax.ShapeDtypeStruct((nt, M, N), jnp.bfloat16),
        grid_spec=pltpu.PrefetchScalarGridSpec(
            num_scalar_prefetch=0,
            grid=grid,
            in_specs=[
                pl.BlockSpec((1, tm, C_in), lambda i, t: (t, i, 0)),
                pl.BlockSpec((C_in, N), lambda i, t: (0, 0)),
                pl.BlockSpec((1, N), lambda i, t: (0, 0)),
            ],
            out_specs=pl.BlockSpec((1, tm, N), lambda i, t: (t, i, 0)),
            scratch_shapes=[pltpu.VMEM((tm, N), jnp.float32)],
        ),
        compiler_params=pltpu.CompilerParams(
            dimension_semantics=("parallel", "arbitrary")),
    )(x, wmat, bias2d)


# ----------------------------------------------------------------------------
# Decoder glue (only 0/1 bf16 spikes are reshaped/transposed between layers)
# ----------------------------------------------------------------------------
@functools.partial(jax.jit, static_argnames=("kernels", "nt"))
def img_csnn_decoder_v3(z, weights, biases, *, kernels, nt):
    """z: [B, C, H, W] (NCHW) -> spike_reconst [nt, B, C_out, H_out, W_out] f32."""
    B, C, H, W = z.shape
    z_flat = z.reshape(B, C * H * W)                          # nn.Flatten
    # Gaussian receptive-field current, hoisted out of the time loop (t-invariant)
    a = jnp.exp(-((z_flat - MU) ** 2) * (0.5 / (SIGMA * SIGMA)))
    pop = pop_encode(a.reshape(1, B * C * H * W), nt)         # [nt, B*C*H*W] bf16
    # rows laid out (b, h, w) x C_in for the matmul form of ConvTranspose2d
    x = pop.reshape(nt, B, C, H, W)
    x = jnp.transpose(x, (0, 1, 3, 4, 2)).reshape(nt, B * H * W, C)

    Hc, Wc = H, W
    n_layers = len(weights)
    for li, (w, bias, k) in enumerate(zip(weights, biases, kernels)):
        C_in, C_out = w.shape[0], w.shape[1]
        N = C_out * k * k
        wmat = w.reshape(C_in, N).astype(jnp.bfloat16)        # bf16 MXU weights
        b2 = jnp.repeat(bias, k * k).reshape(1, N).astype(jnp.float32)
        spk = deconv_if_layer(x, wmat, b2)                    # [nt, B*Hc*Wc, N] bf16
        spk = spk.reshape(nt, B, Hc, Wc, C_out, k, k)
        if li + 1 < n_layers:
            # depth-to-space on 0/1 bf16 spikes, directly into the next layer's
            # (b, h', w') x C_in row layout (no NCHW round trip)
            x = jnp.transpose(spk, (0, 1, 2, 5, 3, 6, 4)).reshape(
                nt, B * Hc * k * Wc * k, C_out)
        else:
            # final layer: NCHW spike reconstruction
            x = jnp.transpose(spk, (0, 1, 4, 2, 5, 3, 6)).reshape(
                nt, B, C_out, Hc * k, Wc * k)
        Hc, Wc = Hc * k, Wc * k
    return x.astype(jnp.float32)


# ----------------------------------------------------------------------------
# Deterministic parameter init (ConvTranspose2d: weight [C_in, C_out, k, k])
# ----------------------------------------------------------------------------
def init_params(key, latent_channel, hidden_channels, kernels):
    weights, biases = [], []
    c_in = latent_channel
    for c_out, k in zip(hidden_channels, kernels):
        key, k1, k2 = jax.random.split(key, 3)
        bound = 1.0 / np.sqrt(c_in * k * k)
        w = jax.random.uniform(k1, (c_in, c_out, k, k), jnp.float32, -bound, bound)
        b = jax.random.uniform(k2, (c_out,), jnp.float32, -bound, bound)
        weights.append(w)
        biases.append(b)
        c_in = c_out
    return tuple(weights), tuple(biases)


# ----------------------------------------------------------------------------
# Pure-JAX reference (same math / same bf16 matmul inputs) for correctness
# ----------------------------------------------------------------------------
def reference_forward(z, weights, biases, kernels, nt):
    B, C, H, W = z.shape
    zf = z.reshape(B, -1)
    a = jnp.exp(-((zf - MU) ** 2) * (0.5 / (SIGMA * SIGMA)))

    def if_scan(cur):
        def step(v, c):
            v = v + c
            s = (v >= VTH).astype(jnp.float32)
            return v - s * VTH, s
        _, s = jax.lax.scan(step, jnp.zeros_like(cur[0]), cur)
        return s

    pop = if_scan(jnp.broadcast_to(a, (nt,) + a.shape))        # [nt, B, D]
    x = pop.reshape(nt, B, C, H, W)
    Hc, Wc = H, W
    for w, b, k in zip(weights, biases, kernels):
        Ci, Co = w.shape[0], w.shape[1]
        rows = jnp.transpose(x, (0, 1, 3, 4, 2)).reshape(nt, B * Hc * Wc, Ci)
        wmat = w.reshape(Ci, Co * k * k).astype(jnp.bfloat16)
        cur = jnp.einsum("tmc,cn->tmn", rows.astype(jnp.bfloat16), wmat,
                         preferred_element_type=jnp.float32)
        cur = cur + jnp.repeat(b, k * k)[None, None, :]
        spk = if_scan(cur)                                      # [nt, M, Co*k*k]
        spk = spk.reshape(nt, B, Hc, Wc, Co, k, k)
        x = jnp.transpose(spk, (0, 1, 4, 2, 5, 3, 6)).reshape(
            nt, B, Co, Hc * k, Wc * k)
        Hc, Wc = Hc * k, Wc * k
    return x


if __name__ == "__main__":
    # Small config consistent with the module:
    #   nt=8, latent_channel=4, latent_size=4, layer_num=2,
    #   trans.hidden_channel=[8, 1] (last = image channels), kernel=stride=[2, 2]
    nt = 8
    latent_channel = 4
    latent_size = 4
    hidden_channels = [8, 1]
    kernels = (2, 2)
    B = 2

    key = jax.random.PRNGKey(0)
    key, kz, kp = jax.random.split(key, 3)
    z = jax.random.normal(kz, (B, latent_channel, latent_size, latent_size),
                          jnp.float32)
    weights, biases = init_params(kp, latent_channel, hidden_channels, kernels)

    out = img_csnn_decoder_v3(z, weights, biases, kernels=kernels, nt=nt)
    out = jax.block_until_ready(out)

    expected_shape = (nt, B, hidden_channels[-1],
                      latent_size * kernels[0] * kernels[1],
                      latent_size * kernels[0] * kernels[1])
    assert out.shape == expected_shape, (out.shape, expected_shape)

    ref = jax.block_until_ready(
        reference_forward(z, weights, biases, kernels, nt))
    out_np = np.asarray(out, dtype=np.float32)
    ref_np = np.asarray(ref, dtype=np.float32)
    # spike-mismatch metric (spikes are 0/1; flips can only come from
    # exact-threshold ties under bf16 accumulation-order differences)
    mismatch = int(np.sum(np.abs(out_np - ref_np) > 0.5))
    budget = max(1, out_np.size // 100)
    assert mismatch <= budget, f"spike mismatches {mismatch} / {out_np.size}"
    print("KERNEL_OK")
</pallas_src>

<mosaic_0001>
module attributes {stable_mosaic.version = 11 : i64} {
  func.func @_pop_encode_kernel(%arg0: i32, %arg1: memref<1x128xf32, #tpu.memory_space<vmem>>, %arg2: memref<8x128xbf16, #tpu.memory_space<vmem>>) attributes {dimension_semantics = [#tpu.dimension_semantics<arbitrary>], iteration_bounds = array<i64: 1>, scalar_prefetch = 0 : i64, scratch_operands = 0 : i64, tpu.core_type = #tpu.core_type<tc>, window_params = [{pipeline_mode = #tpu.pipeline_mode<synchronous>, transform_indices = @transform_0, window_bounds = array<i64: 1, 128>}, {pipeline_mode = #tpu.pipeline_mode<synchronous>, transform_indices = @transform_1, window_bounds = array<i64: 8, 128>}]} {
    %c0 = arith.constant 0 : index
    %c0_0 = arith.constant 0 : index
    %0 = vector.load %arg1[%c0, %c0_0] : memref<1x128xf32, #tpu.memory_space<vmem>>, vector<1x128xf32>
    %cst = arith.constant 0.000000e+00 : f32
    %1 = vector.broadcast %cst : f32 to vector<1x128xf32>
    %2 = arith.addf %1, %0 : vector<1x128xf32>
    %cst_1 = arith.constant 1.000000e+00 : f32
    %3 = vector.broadcast %cst_1 : f32 to vector<1x128xf32>
    %4 = arith.cmpf oge, %2, %3 : vector<1x128xf32>
    %5 = arith.extui %4 : vector<1x128xi1> to vector<1x128xi32>
    %6 = arith.sitofp %5 : vector<1x128xi32> to vector<1x128xf32>
    %cst_2 = arith.constant 1.000000e+00 : f32
    %7 = vector.broadcast %cst_2 : f32 to vector<1x128xf32>
    %8 = arith.mulf %6, %7 : vector<1x128xf32>
    %9 = arith.subf %2, %8 : vector<1x128xf32>
    %10 = arith.addf %9, %0 : vector<1x128xf32>
    %cst_3 = arith.constant 1.000000e+00 : f32
    %11 = vector.broadcast %cst_3 : f32 to vector<1x128xf32>
    %12 = arith.cmpf oge, %10, %11 : vector<1x128xf32>
    %13 = arith.extui %12 : vector<1x128xi1> to vector<1x128xi32>
    %14 = arith.sitofp %13 : vector<1x128xi32> to vector<1x128xf32>
    %cst_4 = arith.constant 1.000000e+00 : f32
    %15 = vector.broadcast %cst_4 : f32 to vector<1x128xf32>
    %16 = arith.mulf %14, %15 : vector<1x128xf32>
    %17 = arith.subf %10, %16 : vector<1x128xf32>
    %18 = arith.addf %17, %0 : vector<1x128xf32>
    %cst_5 = arith.constant 1.000000e+00 : f32
    %19 = vector.broadcast %cst_5 : f32 to vector<1x128xf32>
    %20 = arith.cmpf oge, %18, %19 : vector<1x128xf32>
    %21 = arith.extui %20 : vector<1x128xi1> to vector<1x128xi32>
    %22 = arith.sitofp %21 : vector<1x128xi32> to vector<1x128xf32>
    %cst_6 = arith.constant 1.000000e+00 : f32
    %23 = vector.broadcast %cst_6 : f32 to vector<1x128xf32>
    %24 = arith.mulf %22, %23 : vector<1x128xf32>
    %25 = arith.subf %18, %24 : vector<1x128xf32>
    %26 = arith.addf %25, %0 : vector<1x128xf32>
    %cst_7 = arith.constant 1.000000e+00 : f32
    %27 = vector.broadcast %cst_7 : f32 to vector<1x128xf32>
    %28 = arith.cmpf oge, %26, %27 : vector<1x128xf32>
    %29 = arith.extui %28 : vector<1x128xi1> to vector<1x128xi32>
    %30 = arith.sitofp %29 : vector<1x128xi32> to vector<1x128xf32>
    %cst_8 = arith.constant 1.000000e+00 : f32
    %31 = vector.broadcast %cst_8 : f32 to vector<1x128xf32>
    %32 = arith.mulf %30, %31 : vector<1x128xf32>
    %33 = arith.subf %26, %32 : vector<1x128xf32>
    %34 = arith.addf %33, %0 : vector<1x128xf32>
    %cst_9 = arith.constant 1.000000e+00 : f32
    %35 = vector.broadcast %cst_9 : f32 to vector<1x128xf32>
    %36 = arith.cmpf oge, %34, %35 : vector<1x128xf32>
    %37 = arith.extui %36 : vector<1x128xi1> to vector<1x128xi32>
    %38 = arith.sitofp %37 : vector<1x128xi32> to vector<1x128xf32>
    %cst_10 = arith.constant 1.000000e+00 : f32
    %39 = vector.broadcast %cst_10 : f32 to vector<1x128xf32>
    %40 = arith.mulf %38, %39 : vector<1x128xf32>
    %41 = arith.subf %34, %40 : vector<1x128xf32>
    %42 = arith.addf %41, %0 : vector<1x128xf32>
    %cst_11 = arith.constant 1.000000e+00 : f32
    %43 = vector.broadcast %cst_11 : f32 to vector<1x128xf32>
    %44 = arith.cmpf oge, %42, %43 : vector<1x128xf32>
    %45 = arith.extui %44 : vector<1x128xi1> to vector<1x128xi32>
    %46 = arith.sitofp %45 : vector<1x128xi32> to vector<1x128xf32>
    %cst_12 = arith.constant 1.000000e+00 : f32
    %47 = vector.broadcast %cst_12 : f32 to vector<1x128xf32>
    %48 = arith.mulf %46, %47 : vector<1x128xf32>
    %49 = arith.subf %42, %48 : vector<1x128xf32>
    %50 = arith.addf %49, %0 : vector<1x128xf32>
    %cst_13 = arith.constant 1.000000e+00 : f32
    %51 = vector.broadcast %cst_13 : f32 to vector<1x128xf32>
    %52 = arith.cmpf oge, %50, %51 : vector<1x128xf32>
    %53 = arith.extui %52 : vector<1x128xi1> to vector<1x128xi32>
    %54 = arith.sitofp %53 : vector<1x128xi32> to vector<1x128xf32>
    %cst_14 = arith.constant 1.000000e+00 : f32
    %55 = vector.broadcast %cst_14 : f32 to vector<1x128xf32>
    %56 = arith.mulf %54, %55 : vector<1x128xf32>
    %57 = arith.subf %50, %56 : vector<1x128xf32>
    %58 = arith.addf %57, %0 : vector<1x128xf32>
    %cst_15 = arith.constant 1.000000e+00 : f32
    %59 = vector.broadcast %cst_15 : f32 to vector<1x128xf32>
    %60 = arith.cmpf oge, %58, %59 : vector<1x128xf32>
    %61 = arith.extui %60 : vector<1x128xi1> to vector<1x128xi32>
    %62 = arith.sitofp %61 : vector<1x128xi32> to vector<1x128xf32>
    %63 = tpu.concatenate %6, %14, %22, %30, %38, %46, %54, %62 in 0 : vector<1x128xf32>, vector<1x128xf32>, vector<1x128xf32>, vector<1x128xf32>, vector<1x128xf32>, vector<1x128xf32>, vector<1x128xf32>, vector<1x128xf32> -> vector<8x128xf32>
    %64 = arith.truncf %63 : vector<8x128xf32> to vector<8x128xbf16>
    %c0_16 = arith.constant 0 : index
    %c0_17 = arith.constant 0 : index
    %65 = vector.load %arg2[%c0_16, %c0_17] : memref<8x128xbf16, #tpu.memory_space<vmem>>, vector<8x128xbf16>
    tpu.vector_store %arg2[%c0_16, %c0_17], %64 {strides = array<i32>} : memref<8x128xbf16, #tpu.memory_space<vmem>>, vector<8x128xbf16>,
    return
  }
  func.func @transform_0(%arg0: i32) -> (i32, i32) {
    %c0_i32 = arith.constant 0 : i32
    %c0_i32_0 = arith.constant 0 : i32
    %c0_i32_1 = arith.constant 0 : i32
    return %c0_i32, %c0_i32_0 : i32, i32
  }
  func.func @transform_1(%arg0: i32) -> (i32, i32) {
    %c0_i32 = arith.constant 0 : i32
    %c0_i32_0 = arith.constant 0 : i32
    %c0_i32_1 = arith.constant 0 : i32
    return %c0_i32, %c0_i32_0 : i32, i32
  }
}

module attributes {stable_mosaic.version = 11 : i64} {
  func.func @_deconv_if_kernel(%arg0: i32, %arg1: i32, %arg2: memref<1x32x4xbf16, #tpu.memory_space<vmem>>, %arg3: memref<4x32xbf16, #tpu.memory_space<vmem>>, %arg4: memref<1x32xf32, #tpu.memory_space<vmem>>, %arg5: memref<1x32x32xbf16, #tpu.memory_space<vmem>>, %arg6: memref<32x32xf32, #tpu.memory_space<vmem>>) attributes {dimension_semantics = [#tpu.dimension_semantics<parallel>, #tpu.dimension_semantics<arbitrary>], iteration_bounds = array<i64: 1, 8>, scalar_prefetch = 0 : i64, scratch_operands = 1 : i64, tpu.core_type = #tpu.core_type<tc>, window_params = [{transform_indices = @transform_0, window_bounds = array<i64: 1, 32, 4>}, {pipeline_mode = #tpu.pipeline_mode<synchronous>, transform_indices = @transform_1, window_bounds = array<i64: 4, 32>}, {pipeline_mode = #tpu.pipeline_mode<synchronous>, transform_indices = @transform_2, window_bounds = array<i64: 1, 32>}, {transform_indices = @transform_3, window_bounds = array<i64: 1, 32, 32>}]} {
    %c0_i32 = arith.constant 0 : i32
    %0 = arith.cmpi eq, %arg1, %c0_i32 : i32
    %1 = arith.extui %0 : i1 to i32
    %c0_i32_0 = arith.constant 0 : i32
    %2 = arith.cmpi ne, %1, %c0_i32_0 : i32
    scf.if %2 {
      %cst_16 = arith.constant 0.000000e+00 : f32
      %24 = vector.broadcast %cst_16 : f32 to vector<32x32xf32>
      %c0_17 = arith.constant 0 : index
      %c0_18 = arith.constant 0 : index
      %25 = vector.load %arg6[%c0_17, %c0_18] : memref<32x32xf32, #tpu.memory_space<vmem>>, vector<32x32xf32>
      tpu.vector_store %arg6[%c0_17, %c0_18], %24 {strides = array<i32>} : memref<32x32xf32, #tpu.memory_space<vmem>>, vector<32x32xf32>,
    } else {
    }
    %c0 = arith.constant 0 : index
    %c0_1 = arith.constant 0 : index
    %c0_2 = arith.constant 0 : index
    %3 = vector.load %arg2[%c0, %c0_1, %c0_2] : memref<1x32x4xbf16, #tpu.memory_space<vmem>>, vector<1x32x4xbf16>
    %4 = vector.shape_cast %3 : vector<1x32x4xbf16> to vector<32x4xbf16>
    %c0_3 = arith.constant 0 : index
    %c0_4 = arith.constant 0 : index
    %5 = vector.load %arg3[%c0_3, %c0_4] : memref<4x32xbf16, #tpu.memory_space<vmem>>, vector<4x32xbf16>
    %cst = arith.constant dense<0.000000e+00> : vector<32x32xf32>
    %6 = tpu.matmul %4, %5, %cst {dimension_numbers = #tpu.dot_dimension_numbers<[1], [0], [0], [1], [0, 0, 1, 1], [], []>} : vector<32x4xbf16>, vector<4x32xbf16>, vector<32x32xf32> -> vector<32x32xf32>
    %c0_5 = arith.constant 0 : index
    %c0_6 = arith.constant 0 : index
    %7 = vector.load %arg4[%c0_5, %c0_6] : memref<1x32xf32, #tpu.memory_space<vmem>>, vector<1x32xf32>
    %8 = vector.broadcast %7 : vector<1x32xf32> to vector<32x32xf32>
    %9 = arith.addf %6, %8 : vector<32x32xf32>
    %c0_7 = arith.constant 0 : index
    %c0_8 = arith.constant 0 : index
    %10 = vector.load %arg6[%c0_7, %c0_8] : memref<32x32xf32, #tpu.memory_space<vmem>>, vector<32x32xf32>
    %11 = arith.addf %10, %9 : vector<32x32xf32>
    %cst_9 = arith.constant 1.000000e+00 : f32
    %12 = vector.broadcast %cst_9 : f32 to vector<32x32xf32>
    %13 = arith.cmpf oge, %11, %12 : vector<32x32xf32>
    %14 = arith.extui %13 : vector<32x32xi1> to vector<32x32xi32>
    %15 = arith.sitofp %14 : vector<32x32xi32> to vector<32x32xf32>
    %cst_10 = arith.constant 1.000000e+00 : f32
    %16 = vector.broadcast %cst_10 : f32 to vector<32x32xf32>
    %17 = arith.mulf %15, %16 : vector<32x32xf32>
    %18 = arith.subf %11, %17 : vector<32x32xf32>
    %c0_11 = arith.constant 0 : index
    %c0_12 = arith.constant 0 : index
    %19 = vector.load %arg6[%c0_11, %c0_12] : memref<32x32xf32, #tpu.memory_space<vmem>>, vector<32x32xf32>
    tpu.vector_store %arg6[%c0_11, %c0_12], %18 {strides = array<i32>} : memref<32x32xf32, #tpu.memory_space<vmem>>, vector<32x32xf32>,
    %20 = arith.truncf %15 : vector<32x32xf32> to vector<32x32xbf16>
    %c0_13 = arith.constant 0 : index
    %c0_14 = arith.constant 0 : index
    %c0_15 = arith.constant 0 : index
    %21 = vector.load %arg5[%c0_13, %c0_14, %c0_15] : memref<1x32x32xbf16, #tpu.memory_space<vmem>>, vector<1x32x32xbf16>
    %22 = vector.shape_cast %21 : vector<1x32x32xbf16> to vector<32x32xbf16>
    %23 = vector.shape_cast %20 : vector<32x32xbf16> to vector<1x32x32xbf16>
    tpu.vector_store %arg5[%c0_13, %c0_14, %c0_15], %23 {strides = array<i32>} : memref<1x32x32xbf16, #tpu.memory_space<vmem>>, vector<1x32x32xbf16>,
    return
  }
  func.func @transform_0(%arg0: i32, %arg1: i32) -> (i32, i32, i32) {
    %c0_i32 = arith.constant 0 : i32
    %c0_i32_0 = arith.constant 0 : i32
    return %arg1, %arg0, %c0_i32 : i32, i32, i32
  }
  func.func @transform_1(%arg0: i32, %arg1: i32) -> (i32, i32) {
    %c0_i32 = arith.constant 0 : i32
    %c0_i32_0 = arith.constant 0 : i32
    %c0_i32_1 = arith.constant 0 : i32
    return %c0_i32, %c0_i32_0 : i32, i32
  }
  func.func @transform_2(%arg0: i32, %arg1: i32) -> (i32, i32) {
    %c0_i32 = arith.constant 0 : i32
    %c0_i32_0 = arith.constant 0 : i32
    %c0_i32_1 = arith.constant 0 : i32
    return %c0_i32, %c0_i32_0 : i32, i32
  }
  func.func @transform_3(%arg0: i32, %arg1: i32) -> (i32, i32, i32) {
    %c0_i32 = arith.constant 0 : i32
    %c0_i32_0 = arith.constant 0 : i32
    return %arg1, %arg0, %c0_i32 : i32, i32, i32
  }
}

module attributes {stable_mosaic.version = 11 : i64} {
  func.func @_deconv_if_kernel(%arg0: i32, %arg1: i32, %arg2: memref<1x128x8xbf16, #tpu.memory_space<vmem>>, %arg3: memref<8x4xbf16, #tpu.memory_space<vmem>>, %arg4: memref<1x4xf32, #tpu.memory_space<vmem>>, %arg5: memref<1x128x4xbf16, #tpu.memory_space<vmem>>, %arg6: memref<128x4xf32, #tpu.memory_space<vmem>>) attributes {dimension_semantics = [#tpu.dimension_semantics<parallel>, #tpu.dimension_semantics<arbitrary>], iteration_bounds = array<i64: 1, 8>, scalar_prefetch = 0 : i64, scratch_operands = 1 : i64, tpu.core_type = #tpu.core_type<tc>, window_params = [{transform_indices = @transform_0, window_bounds = array<i64: 1, 128, 8>}, {pipeline_mode = #tpu.pipeline_mode<synchronous>, transform_indices = @transform_1, window_bounds = array<i64: 8, 4>}, {pipeline_mode = #tpu.pipeline_mode<synchronous>, transform_indices = @transform_2, window_bounds = array<i64: 1, 4>}, {transform_indices = @transform_3, window_bounds = array<i64: 1, 128, 4>}]} {
    %c0_i32 = arith.constant 0 : i32
    %0 = arith.cmpi eq, %arg1, %c0_i32 : i32
    %1 = arith.extui %0 : i1 to i32
    %c0_i32_0 = arith.constant 0 : i32
    %2 = arith.cmpi ne, %1, %c0_i32_0 : i32
    scf.if %2 {
      %cst_16 = arith.constant 0.000000e+00 : f32
      %24 = vector.broadcast %cst_16 : f32 to vector<128x4xf32>
      %c0_17 = arith.constant 0 : index
      %c0_18 = arith.constant 0 : index
      %25 = vector.load %arg6[%c0_17, %c0_18] : memref<128x4xf32, #tpu.memory_space<vmem>>, vector<128x4xf32>
      tpu.vector_store %arg6[%c0_17, %c0_18], %24 {strides = array<i32>} : memref<128x4xf32, #tpu.memory_space<vmem>>, vector<128x4xf32>,
    } else {
    }
    %c0 = arith.constant 0 : index
    %c0_1 = arith.constant 0 : index
    %c0_2 = arith.constant 0 : index
    %3 = vector.load %arg2[%c0, %c0_1, %c0_2] : memref<1x128x8xbf16, #tpu.memory_space<vmem>>, vector<1x128x8xbf16>
    %4 = vector.shape_cast %3 : vector<1x128x8xbf16> to vector<128x8xbf16>
    %c0_3 = arith.constant 0 : index
    %c0_4 = arith.constant 0 : index
    %5 = vector.load %arg3[%c0_3, %c0_4] : memref<8x4xbf16, #tpu.memory_space<vmem>>, vector<8x4xbf16>
    %cst = arith.constant dense<0.000000e+00> : vector<128x4xf32>
    %6 = tpu.matmul %4, %5, %cst {dimension_numbers = #tpu.dot_dimension_numbers<[1], [0], [0], [1], [0, 0, 1, 1], [], []>} : vector<128x8xbf16>, vector<8x4xbf16>, vector<128x4xf32> -> vector<128x4xf32>
    %c0_5 = arith.constant 0 : index
    %c0_6 = arith.constant 0 : index
    %7 = vector.load %arg4[%c0_5, %c0_6] : memref<1x4xf32, #tpu.memory_space<vmem>>, vector<1x4xf32>
    %8 = vector.broadcast %7 : vector<1x4xf32> to vector<128x4xf32>
    %9 = arith.addf %6, %8 : vector<128x4xf32>
    %c0_7 = arith.constant 0 : index
    %c0_8 = arith.constant 0 : index
    %10 = vector.load %arg6[%c0_7, %c0_8] : memref<128x4xf32, #tpu.memory_space<vmem>>, vector<128x4xf32>
    %11 = arith.addf %10, %9 : vector<128x4xf32>
    %cst_9 = arith.constant 1.000000e+00 : f32
    %12 = vector.broadcast %cst_9 : f32 to vector<128x4xf32>
    %13 = arith.cmpf oge, %11, %12 : vector<128x4xf32>
    %14 = arith.extui %13 : vector<128x4xi1> to vector<128x4xi32>
    %15 = arith.sitofp %14 : vector<128x4xi32> to vector<128x4xf32>
    %cst_10 = arith.constant 1.000000e+00 : f32
    %16 = vector.broadcast %cst_10 : f32 to vector<128x4xf32>
    %17 = arith.mulf %15, %16 : vector<128x4xf32>
    %18 = arith.subf %11, %17 : vector<128x4xf32>
    %c0_11 = arith.constant 0 : index
    %c0_12 = arith.constant 0 : index
    %19 = vector.load %arg6[%c0_11, %c0_12] : memref<128x4xf32, #tpu.memory_space<vmem>>, vector<128x4xf32>
    tpu.vector_store %arg6[%c0_11, %c0_12], %18 {strides = array<i32>} : memref<128x4xf32, #tpu.memory_space<vmem>>, vector<128x4xf32>,
    %20 = arith.truncf %15 : vector<128x4xf32> to vector<128x4xbf16>
    %c0_13 = arith.constant 0 : index
    %c0_14 = arith.constant 0 : index
    %c0_15 = arith.constant 0 : index
    %21 = vector.load %arg5[%c0_13, %c0_14, %c0_15] : memref<1x128x4xbf16, #tpu.memory_space<vmem>>, vector<1x128x4xbf16>
    %22 = vector.shape_cast %21 : vector<1x128x4xbf16> to vector<128x4xbf16>
    %23 = vector.shape_cast %20 : vector<128x4xbf16> to vector<1x128x4xbf16>
    tpu.vector_store %arg5[%c0_13, %c0_14, %c0_15], %23 {strides = array<i32>} : memref<1x128x4xbf16, #tpu.memory_space<vmem>>, vector<1x128x4xbf16>,
    return
  }
  func.func @transform_0(%arg0: i32, %arg1: i32) -> (i32, i32, i32) {
    %c0_i32 = arith.constant 0 : i32
    %c0_i32_0 = arith.constant 0 : i32
    return %arg1, %arg0, %c0_i32 : i32, i32, i32
  }
  func.func @transform_1(%arg0: i32, %arg1: i32) -> (i32, i32) {
    %c0_i32 = arith.constant 0 : i32
    %c0_i32_0 = arith.constant 0 : i32
    %c0_i32_1 = arith.constant 0 : i32
    return %c0_i32, %c0_i32_0 : i32, i32
  }
  func.func @transform_2(%arg0: i32, %arg1: i32) -> (i32, i32) {
    %c0_i32 = arith.constant 0 : i32
    %c0_i32_0 = arith.constant 0 : i32
    %c0_i32_1 = arith.constant 0 : i32
    return %c0_i32, %c0_i32_0 : i32, i32
  }
  func.func @transform_3(%arg0: i32, %arg1: i32) -> (i32, i32, i32) {
    %c0_i32 = arith.constant 0 : i32
    %c0_i32_0 = arith.constant 0 : i32
    return %arg1, %arg0, %c0_i32 : i32, i32, i32
  }
}

</mosaic_0001>

<llo_original>
// kernel: img_csnn_decoder_v3.3
$region0: #{img_csnn_decoder_v3.3}
  #allocation0 [shape = 'u32[]', space=smem, size = 0x4, offset = 0x4, fixed_abs, tag = 'smem constant byte address 0x4 - core index']
  #allocation1 [shape = 'u32[144,128]{1,0:T(1,128)}', space=vmem, size = 0x12000, scoped, tag = 'internal scratch']
  %s0 = inlined_call_operand.vmem [shape: f32[1,128], index: 0, kind: input, shape index: {}]
  %s1 = inlined_call_operand.vmem [shape: bf16[8,128], index: 1, kind: output, shape index: {}]
  %s2 = sld [smem:[#allocation0]]
  $region14: #{img_csnn_decoder_v3.3} parent=0
    _
  %s4 = ssub.s32 1, %s2
  %s5 = scalar_select 0, %s4, %s2
  // Predicated region
  $region2: #{img_csnn_decoder_v3.3} parent=0 // pred_check
    _
  $region3: #{img_csnn_decoder_v3.3} parent=0 // pred_check_branch
    %7 = sbr.rel (0) target = $region5
  $region4: #{img_csnn_decoder_v3.3} parent=0 // pred_region
    _
  $region5: #{img_csnn_decoder_v3.3} parent=0 // pred_fallthru
    _
  %v8 = vld [vmem:[%s0] sm:$0x1]
  %v9 = vadd.f32 %v8, 0.0
  %vm10 = vcmp.ge.f32.partialorder %v9, 1.0
  %v11 = vsel %vm10, 1, 0
  %v12 = vcvt.s32.f32 %v11
  %v13 = vsub.f32 %v9, %v12
  %v14 = vadd.f32 %v13, %v8
  %vm15 = vcmp.ge.f32.partialorder %v14, 1.0
  %v16 = vsel %vm15, 1, 0
  %v17 = vcvt.s32.f32 %v16
  %v18 = vsub.f32 %v14, %v17
  %v19 = vadd.f32 %v18, %v8
  %vm20 = vcmp.ge.f32.partialorder %v19, 1.0
  %v21 = vsel %vm20, 1, 0
  %v22 = vcvt.s32.f32 %v21
  %v23 = vsub.f32 %v19, %v22
  %v24 = vadd.f32 %v23, %v8
  %vm25 = vcmp.ge.f32.partialorder %v24, 1.0
  %v26 = vsel %vm25, 1, 0
  %v27 = vcvt.s32.f32 %v26
  %v28 = vsub.f32 %v24, %v27
  %v29 = vadd.f32 %v28, %v8
  %vm30 = vcmp.ge.f32.partialorder %v29, 1.0
  %v31 = vsel %vm30, 1, 0
  %v32 = vcvt.s32.f32 %v31
  %v33 = vsub.f32 %v29, %v32
  %v34 = vadd.f32 %v33, %v8
  %vm35 = vcmp.ge.f32.partialorder %v34, 1.0
  %v36 = vsel %vm35, 1, 0
  %v37 = vcvt.s32.f32 %v36
  %v38 = vsub.f32 %v34, %v37
  %v39 = vadd.f32 %v38, %v8
  %vm40 = vcmp.ge.f32.partialorder %v39, 1.0
  %v41 = vsel %vm40, 1, 0
  %v42 = vcvt.s32.f32 %v41
  %v43 = vsub.f32 %v39, %v42
  %v44 = vadd.f32 %v43, %v8
  %vm45 = vcmp.ge.f32.partialorder %v44, 1.0
  %v46 = vsel %vm45, 1, 0
  %v47 = vcvt.s32.f32 %v46
  %v49 = vlaneseq
  %v50 = vshrl.u32 %v49, 7
  %v51 = vsub.s32 0, %v50
  %v52 = vrot.slane %v17, %v51
  %v55 = vlaneseq
  %v56 = vshrl.u32 %v55, 7
  %v57 = vsub.s32 0, %v56
  %v58 = vrot.slane %v22, %v57
  %v61 = vlaneseq
  %v62 = vshrl.u32 %v61, 7
  %v63 = vsub.s32 0, %v62
  %v64 = vrot.slane %v27, %v63
  %v67 = vlaneseq
  %v68 = vshrl.u32 %v67, 7
  %v69 = vsub.s32 0, %v68
  %v70 = vrot.slane %v32, %v69
  %v73 = vlaneseq
  %v74 = vshrl.u32 %v73, 7
  %v75 = vsub.s32 0, %v74
  %v76 = vrot.slane %v37, %v75
  %v79 = vlaneseq
  %v80 = vshrl.u32 %v79, 7
  %v81 = vsub.s32 0, %v80
  %v82 = vrot.slane %v42, %v81
  %v85 = vlaneseq
  %v86 = vshrl.u32 %v85, 7
  %v87 = vsub.s32 0, %v86
  %v88 = vrot.slane %v47, %v87
  %vm90 = vcmask 1040384
  %v91 = vsel %vm90, %v12, %v52
  %vm92 = vcmask 1041408
  %v93 = vsel %vm92, %v91, %v58
  %vm94 = vcmask 1042432
  %v95 = vsel %vm94, %v93, %v64
  %vm96 = vcmask 1043456
  %v97 = vsel %vm96, %v95, %v70
  %vm98 = vcmask 1044480
  %v99 = vsel %vm98, %v97, %v76
  %vm100 = vcmask 1045504
  %v101 = vsel %vm100, %v99, %v82
  %vm102 = vcmask 1046528
  %v103 = vsel %vm102, %v101, %v88
  %v104 = vpack.c.bf16 %v103, %v103
  %105 = vst [vmem:[%s1] sm:$0xf] %v104
  // Predicated region
  $region6: #{img_csnn_decoder_v3.3} parent=0 // pred_check
    _
  $region7: #{img_csnn_decoder_v3.3} parent=0 // pred_check_branch
    %107 = sbr.rel (0) target = $region9
  $region8: #{img_csnn_decoder_v3.3} parent=0 // pred_region
    _
  $region9: #{img_csnn_decoder_v3.3} parent=0 // pred_fallthru
    _
  // Predicated region
  $region10: #{img_csnn_decoder_v3.3} parent=0 // pred_check
    _
  $region11: #{img_csnn_decoder_v3.3} parent=0 // pred_check_branch
    %109 = sbr.rel (0) target = $region13
  $region12: #{img_csnn_decoder_v3.3} parent=0 // pred_region
    _
  $region13: #{img_csnn_decoder_v3.3} parent=0 // pred_fallthru
    _

// kernel: img_csnn_decoder_v3.4
$region0: #{img_csnn_decoder_v3.4}
  #allocation0 [shape = 'u32[]', space=smem, size = 0x4, offset = 0x4, fixed_abs, tag = 'smem constant byte address 0x4 - core index']
  #allocation1 [shape = 'u32[144,128]{1,0:T(1,128)}', space=vmem, size = 0x12000, scoped, tag = 'internal scratch']
  #allocation2 [shape = 'f32[32,32]{1,0:T(8,128)}', space=vmem, size = 0x4000, scoped, tag = 'scratch operand']
  %s0 = inlined_call_operand.vmem [shape: bf16[8,32,4], index: 0, kind: input, shape index: {}]
  %s1 = inlined_call_operand.vmem [shape: bf16[4,32], index: 1, kind: input, shape index: {}]
  %s2 = inlined_call_operand.vmem [shape: f32[1,32], index: 2, kind: input, shape index: {}]
  %s3 = inlined_call_operand.vmem [shape: bf16[8,32,32], index: 3, kind: output, shape index: {}]
  %s4 = sld [smem:[#allocation0]]
  $region49: #{img_csnn_decoder_v3.4} parent=0
    _
  %s6 = ssub.s32 1, %s4
  %s7 = scalar_select 0, %s6, %s4
  loop: start=0, step=1, limit=10
  $region2: #{img_csnn_decoder_v3.4} parent=0 // loop_pre_header
    _
  $region3: #{img_csnn_decoder_v3.4} parent=0 // loop_header
    %s9 = sphi 0, %s13
    %p10 = scmp.ge.s32.totalorder %s9, 10
    %s16 = sphi 0, %s28
    %s17 = sphi 0, %s24
    %s18 = sphi 0, %s16
    %s19 = sphi 0, %s17
    %s20 = sphi 0, %s18
    %s21 = sphi 0, %s19
    %s33 = sphi 0, %s35
    %s36 = sphi 0, %s33
    %s37 = sphi 0, %s36
    %s53 = sphi 0, %s37
    %s57 = sphi 0, %s57
    %s59 = sphi 0, %s57
    %s60 = sphi 0, %s59
    %s74 = sphi 0, %s60
    %s78 = sphi 0, %s78
    %s80 = sphi 0, %s78
    %s81 = sphi 0, %s80
    %s95 = sphi 0, %s81
    %s103 = sphi 0, %s105
    %s106 = sphi 0, %s103
    %s107 = sphi 0, %s106
    %s123 = sphi 0, %s107
  $region4: #{img_csnn_decoder_v3.4} parent=0 // loop_header_branch
    %12 = sbr.rel (%p10) target = $region8
  $region5: #{img_csnn_decoder_v3.4} parent=0 // loop_body
    %s14 = ssub.s32 %s9, 1
    %s15 = ssub.s32 %s9, 2
    %s22 = sadd.s32 1, %s17
    %p23 = scmp.ge.s32.totalorder %s22, 8
    %s24 = scalar_select %p23, 0, %s22
    %s25 = sadd.s32 1, %s16
    %s26 = scalar_select %p23, %s25, %s16
    %p27 = scmp.ge.s32.totalorder %s26, 1
    %s28 = scalar_select %p27, 0, %s26
    %s29 = ssub.s32 %s17, %s24
    %s30 = ssub.s32 %s16, %s28
    %s31 = sor.u32 %s29, %s30
    %p32 = scmp.eq.s32.totalorder %s31, 0
    %s34 = sadd.s32 %s33, 1
    %s35 = scalar_select %p32, %s33, %s34
    %p38 = pneg %p32
    %p39 = scmp.eq.s32.totalorder %s9, 7
    %p40 = por %p38, %p39
    %p41 = scmp.ne.s32.totalorder %s33, %s36
    %p42 = scmp.eq.s32.totalorder %s9, 0
    %p43 = por %p41, %p42
    %p44 = scmp.ne.s32.totalorder %s33, %s36
    %p45 = scmp.eq.s32.totalorder %s14, 7
    %p46 = por %p44, %p45
    %p47 = scmp.ne.s32.totalorder %s36, %s37
    %p48 = scmp.eq.s32.totalorder %s14, 0
    %p49 = por %p47, %p48
    %p50 = scmp.ne.s32.totalorder %s36, %s37
    %p51 = scmp.eq.s32.totalorder %s15, 7
    %p52 = por %p50, %p51
    %p54 = scmp.ne.s32.totalorder %s37, %s53
    %p55 = scmp.eq.s32.totalorder %s15, 0
    %p56 = por %p54, %p55
    %s58 = sadd.s32 %s57, 1
    %p61 = scmp.eq.s32.totalorder %s9, 7
    %p62 = scmp.ne.s32.totalorder %s57, %s59
    %p63 = scmp.eq.s32.totalorder %s9, 0
    %p64 = por %p62, %p63
    %p65 = scmp.ne.s32.totalorder %s57, %s59
    %p66 = scmp.eq.s32.totalorder %s14, 7
    %p67 = por %p65, %p66
    %p68 = scmp.ne.s32.totalorder %s59, %s60
    %p69 = scmp.eq.s32.totalorder %s14, 0
    %p70 = por %p68, %p69
    %p71 = scmp.ne.s32.totalorder %s59, %s60
    %p72 = scmp.eq.s32.totalorder %s15, 7
    %p73 = por %p71, %p72
    %p75 = scmp.ne.s32.totalorder %s60, %s74
    %p76 = scmp.eq.s32.totalorder %s15, 0
    %p77 = por %p75, %p76
    %s79 = sadd.s32 %s78, 1
    %p82 = scmp.eq.s32.totalorder %s9, 7
    %p83 = scmp.ne.s32.totalorder %s78, %s80
    %p84 = scmp.eq.s32.totalorder %s9, 0
    %p85 = por %p83, %p84
    %p86 = scmp.ne.s32.totalorder %s78, %s80
    %p87 = scmp.eq.s32.totalorder %s14, 7
    %p88 = por %p86, %p87
    %p89 = scmp.ne.s32.totalorder %s80, %s81
    %p90 = scmp.eq.s32.totalorder %s14, 0
    %p91 = por %p89, %p90
    %p92 = scmp.ne.s32.totalorder %s80, %s81
    %p93 = scmp.eq.s32.totalorder %s15, 7
    %p94 = por %p92, %p93
    %p96 = scmp.ne.s32.totalorder %s81, %s95
    %p97 = scmp.eq.s32.totalorder %s15, 0
    %p98 = por %p96, %p97
    %s99 = ssub.s32 %s17, %s24
    %s100 = ssub.s32 %s16, %s28
    %s101 = sor.u32 %s99, %s100
    %p102 = scmp.eq.s32.totalorder %s101, 0
    %s104 = sadd.s32 %s103, 1
    %s105 = scalar_select %p102, %s103, %s104
    %p108 = pneg %p102
    %p109 = scmp.eq.s32.totalorder %s9, 7
    %p110 = por %p108, %p109
    %p111 = scmp.ne.s32.totalorder %s103, %s106
    %p112 = scmp.eq.s32.totalorder %s9, 0
    %p113 = por %p111, %p112
    %p114 = scmp.ne.s32.totalorder %s103, %s106
    %p115 = scmp.eq.s32.totalorder %s14, 7
    %p116 = por %p114, %p115
    %p117 = scmp.ne.s32.totalorder %s106, %s107
    %p118 = scmp.eq.s32.totalorder %s14, 0
    %p119 = por %p117, %p118
    %p120 = scmp.ne.s32.totalorder %s106, %s107
    %p121 = scmp.eq.s32.totalorder %s15, 7
    %p122 = por %p120, %p121
    %p124 = scmp.ne.s32.totalorder %s107, %s123
    %p125 = scmp.eq.s32.totalorder %s15, 0
    %p126 = por %p124, %p125
    %p127 = scmp.le.s32.totalorder 1, %s9
    %p128 = scmp.lt.s32.totalorder %s9, 9
    %p129 = pnand %p127, %p128
    %p130 = pneg %p129
    // Predicated region
    $region9: #{img_csnn_decoder_v3.4} parent=5 // pred_check
      _
    $region10: #{img_csnn_decoder_v3.4} parent=5 // pred_check_branch
      %132 = sbr.rel (%p129) target = $region12
    $region11: #{img_csnn_decoder_v3.4} parent=5 // pred_region
      %s133 = ssub.s32 %s9, 1
      // Predicated region
      $region13: #{img_csnn_decoder_v3.4} parent=11 // pred_check
        %p134 = pneg %p70
      $region14: #{img_csnn_decoder_v3.4} parent=11 // pred_check_branch
        %136 = sbr.rel (%p134) target = $region16
      $region15: #{img_csnn_decoder_v3.4} parent=11 // pred_region
        _
      $region16: #{img_csnn_decoder_v3.4} parent=11 // pred_fallthru
        _
      // Predicated region
      $region17: #{img_csnn_decoder_v3.4} parent=11 // pred_check
        %p137 = pneg %p91
      $region18: #{img_csnn_decoder_v3.4} parent=11 // pred_check_branch
        %139 = sbr.rel (%p137) target = $region20
      $region19: #{img_csnn_decoder_v3.4} parent=11 // pred_region
        _
      $region20: #{img_csnn_decoder_v3.4} parent=11 // pred_fallthru
        _
    $region12: #{img_csnn_decoder_v3.4} parent=5 // pred_fallthru
      _
    %p140 = scmp.lt.s32.totalorder %s9, 8
    // Predicated region
    $region21: #{img_csnn_decoder_v3.4} parent=5 // pred_check
      %p141 = pneg %p140
    $region22: #{img_csnn_decoder_v3.4} parent=5 // pred_check_branch
      %143 = sbr.rel (%p141) target = $region24
    $region23: #{img_csnn_decoder_v3.4} parent=5 // pred_region
      // Predicated region
      $region25: #{img_csnn_decoder_v3.4} parent=23 // pred_check
        %p144 = pneg %p43
      $region26: #{img_csnn_decoder_v3.4} parent=23 // pred_check_branch
        %146 = sbr.rel (%p144) target = $region28
      $region27: #{img_csnn_decoder_v3.4} parent=23 // pred_region
        %s147 = smul.u32 4, %s16
        %p148 = scmp.lt.s32.totalorder %s17, 7
        %s149 = scalar_select %p148, %s17, 7
        %p150 = scmp.lt.s32.totalorder %s147, 3
        %s151 = scalar_select %p150, %s147, 3
        %s152 = smul.addr %s149, 4
        %s153 = sadd.s32 %s151, %s152
        %s154 = smul.addr %s153, 4
        %s155 = scalar_lea.vmem %s0, %s154
        %s156 = smul.u32 4, %s16
      $region28: #{img_csnn_decoder_v3.4} parent=23 // pred_fallthru
        _
    $region24: #{img_csnn_decoder_v3.4} parent=5 // pred_fallthru
      _
    %p157 = scmp.le.s32.totalorder 1, %s9
    %p158 = scmp.lt.s32.totalorder %s9, 9
    %p159 = pnand %p157, %p158
    %p160 = pneg %p159
    // Predicated region
    $region29: #{img_csnn_decoder_v3.4} parent=5 // pred_check
      _
    $region30: #{img_csnn_decoder_v3.4} parent=5 // pred_check_branch
      %162 = sbr.rel (%p159) target = $region32
    $region31: #{img_csnn_decoder_v3.4} parent=5 // pred_region
      %s163 = ssub.s32 %s9, 1
      %s164 = smul.u32 4, %s18
      %p165 = scmp.lt.s32.totalorder %s19, 7
      %s166 = scalar_select %p165, %s19, 7
      %p167 = scmp.lt.s32.totalorder %s164, 3
      %s168 = scalar_select %p167, %s164, 3
      %s169 = smul.addr %s166, 4
      %s170 = sadd.s32 %s168, %s169
      %s171 = smul.addr %s170, 4
      %s172 = scalar_lea.vmem %s0, %s171
      %p173 = pneg %p49
      %p174 = pneg %p46
      %p175 = pneg %p70
      %p176 = pneg %p67
      %p177 = pneg %p91
      %p178 = pneg %p88
      %p179 = pneg %p119
      %p180 = pneg %p116
      %s181 = smul.u32 4, %s18
      %p182 = scmp.lt.s32.totalorder %s19, 7
      %s183 = scalar_select %p182, %s19, 7
      %p184 = scmp.lt.s32.totalorder %s181, 3
      %s185 = scalar_select %p184, %s181, 3
      %s186 = smul.addr %s183, 4
      %s187 = sadd.s32 %s185, %s186
      %s188 = smul.addr %s187, 4
      %s189 = scalar_lea.vmem %s3, %s188
      %s190 = smul.u32 4, %s18
      %p191 = scmp.lt.s32.totalorder %s19, 7
      %s192 = scalar_select %p191, %s19, 7
      %p193 = scmp.lt.s32.totalorder %s190, 3
      %s194 = scalar_select %p193, %s190, 3
      %s195 = smul.addr %s192, 4
      %s196 = sadd.s32 %s194, %s195
      %s197 = smul.addr %s196, 4
      %s198 = scalar_lea.vmem %s0, %s197
      %s199 = smul.u32 4, %s18
      %s200 = smul.u32 4, %s18
      %p201 = scmp.lt.s32.totalorder %s19, 7
      %s202 = scalar_select %p201, %s19, 7
      %p203 = scmp.lt.s32.totalorder %s200, 3
      %s204 = scalar_select %p203, %s200, 3
      %s205 = smul.addr %s202, 4
      %s206 = sadd.s32 %s204, %s205
      %s207 = smul.addr %s206, 4
      %s208 = scalar_lea.vmem %s3, %s207
      %s209 = smul.u32 4, %s18
      %p211 = scmp.eq.s32.totalorder %s19, 0
      // Predicated region
      $region33: #{img_csnn_decoder_v3.4} parent=31 // pred_check
        %p212 = pneg %p211
      $region34: #{img_csnn_decoder_v3.4} parent=31 // pred_check_branch
        %214 = sbr.rel (%p212) target = $region36
      $region35: #{img_csnn_decoder_v3.4} parent=31 // pred_region
        %vm215 = vcmask 261120
        %216 = vst.msk [vmem:[#allocation2] sm:$0xff] %vm215, 0.0
        %217 = vst.msk [vmem:[#allocation2 + $0x8] sm:$0xff] %vm215, 0.0
        %218 = vst.msk [vmem:[#allocation2 + $0x10] sm:$0xff] %vm215, 0.0
        %219 = vst.msk [vmem:[#allocation2 + $0x18] sm:$0xff] %vm215, 0.0
      $region36: #{img_csnn_decoder_v3.4} parent=31 // pred_fallthru
        _
      %v220 = vld [vmem:[%s198] sm:$0xf]
      %v221 = vld [vmem:[%s198 + $0x4] sm:$0xf]
      %v222 = vld [vmem:[%s198 + $0x8] sm:$0xf]
      %v223 = vld [vmem:[%s198 + $0xc] sm:$0xf]
      %v224 = vld [vmem:[%s1] sm:$0x3]
      %v225 = vld [vmem:[%s2] sm:$0x1]
      %v227 = vlaneseq
      %v228 = vshrl.u32 %v227, 7
      %v229 = vsub.s32 0, %v228
      %v230 = vrot.slane %v225, %v229
      %v236 = vunpack.c.l.b16 %v220
      %v237 = vunpack.c.l.b16 %v221
      %v238 = vunpack.c.l.b16 %v222
      %v239 = vunpack.c.l.b16 %v223
      %v240 = vpack.c.b16 %v237, %v236
      %v241 = vpack.c.b16 %v239, %v238
      %vm242 = vcmask 31744
      %v244 = vsel %vm242, %v240, 0
      %v247 = vsel %vm242, %v241, 0
      %vm249 = vcmask 1041408
      %v251 = vsel %vm249, %v224, 0
      %253 = vmatprep.subr.bf16.mxu0 0
      %254 = vmatpush1.bf16.msra.mxu0 %v251
      %255 = vmatprep.subr.bf16.mxu0 0
      %256 = vmatpush1.bf16.msra.mxu0 0
      %257 = vmatprep.subr.bf16.mxu0 0
      %258 = vmatpush1.bf16.msra.mxu0 0
      %259 = vmatprep.subr.bf16.mxu0 0
      %260 = vmatpush1.bf16.msra.mxu0 0
      %261 = vmatprep.subr.bf16.mxu0 0
      %262 = vmatpush1.bf16.msra.mxu0 0
      %263 = vmatprep.subr.bf16.mxu0 0
      %264 = vmatpush1.bf16.msra.mxu0 0
      %265 = vmatprep.subr.bf16.mxu0 0
      %266 = vmatpush1.bf16.msra.mxu0 0
      %267 = vmatprep.subr.bf16.mxu0 0
      %268 = vmatpush1.bf16.msra.mxu0 0
      %269 = vmatprep.subr.bf16.mxu0 0
      %270 = vmatpush1.bf16.msra.mxu0 0
      %271 = vmatprep.subr.bf16.mxu0 0
      %272 = vmatpush1.bf16.msra.mxu0 0
      %273 = vmatprep.subr.bf16.mxu0 0
      %274 = vmatpush1.bf16.msra.mxu0 0
      %275 = vmatprep.subr.bf16.mxu0 0
      %276 = vmatpush1.bf16.msra.mxu0 0
      %277 = vmatprep.subr.bf16.mxu0 0
      %278 = vmatpush1.bf16.msra.mxu0 0
      %279 = vmatprep.subr.bf16.mxu0 0
      %280 = vmatpush1.bf16.msra.mxu0 0
      %281 = vmatprep.subr.bf16.mxu0 0
      %282 = vmatpush1.bf16.msra.mxu0 0
      %283 = vmatprep.subr.bf16.mxu0 0
      %284 = vmatpush1.bf16.msra.mxu0 0
      %285 = vmatprep.mubr.bf16.mxu0 0
      %286 = vmatmul.mubr.bf16.gmra.mrb[0].mxu0 %v244
      %v287 = vpop.f32.mrb[0].mxu0
      %v288 = vadd.f32 %v230, %v287
      %v289 = vpop.f32.mrb[0].mxu0
      %v290 = vpop.f32.mrb[0].mxu0
      %v291 = vadd.f32 %v230, %v290
      %v292 = vpop.f32.mrb[0].mxu0
      %293 = vmatprep.mubr.bf16.mxu0 0
      %294 = vmatmul.mubr.bf16.gmra.mrb[0].mxu0 %v247
      %v295 = vpop.f32.mrb[0].mxu0
      %v296 = vadd.f32 %v230, %v295
      %v297 = vpop.f32.mrb[0].mxu0
      %v298 = vpop.f32.mrb[0].mxu0
      %v299 = vadd.f32 %v230, %v298
      %v300 = vpop.f32.mrb[0].mxu0
      %301 = vdwg.mxu0
      %v302 = vld [vmem:[#allocation2] sm:$0xff]
      %v303 = vld [vmem:[#allocation2 + $0x8] sm:$0xff]
      %v304 = vld [vmem:[#allocation2 + $0x10] sm:$0xff]
      %v305 = vld [vmem:[#allocation2 + $0x18] sm:$0xff]
      %v306 = vadd.f32 %v302, %v288
      %v307 = vadd.f32 %v303, %v291
      %v308 = vadd.f32 %v304, %v296
      %v309 = vadd.f32 %v305, %v299
      %vm310 = vcmp.ge.f32.partialorder %v306, 1.0
      %vm311 = vcmp.ge.f32.partialorder %v307, 1.0
      %vm312 = vcmp.ge.f32.partialorder %v308, 1.0
      %vm313 = vcmp.ge.f32.partialorder %v309, 1.0
      %v314 = vsel %vm310, 1, 0
      %v315 = vsel %vm311, 1, 0
      %v316 = vsel %vm312, 1, 0
      %v317 = vsel %vm313, 1, 0
      %v318 = vcvt.s32.f32 %v314
      %v319 = vcvt.s32.f32 %v315
      %v320 = vcvt.s32.f32 %v316
      %v321 = vcvt.s32.f32 %v317
      %v322 = vsub.f32 %v306, %v318
      %v323 = vsub.f32 %v307, %v319
      %v324 = vsub.f32 %v308, %v320
      %v325 = vsub.f32 %v309, %v321
      %vm326 = vcmask 261120
      %327 = vst.msk [vmem:[#allocation2] sm:$0xff] %vm326, %v322
      %328 = vst.msk [vmem:[#allocation2 + $0x8] sm:$0xff] %vm326, %v323
      %329 = vst.msk [vmem:[#allocation2 + $0x10] sm:$0xff] %vm326, %v324
      %330 = vst.msk [vmem:[#allocation2 + $0x18] sm:$0xff] %vm326, %v325
      %v331 = vpack.c.bf16 %v319, %v318
      %v332 = vpack.c.bf16 %v321, %v320
      %v335 = vunpack.c.l.b16 %v331
      %v336 = vunpack.c.h.b16 %v331
      %v337 = vunpack.c.l.b16 %v332
      %v338 = vunpack.c.h.b16 %v332
      %v339 = vpack.c.b16 %v335, %v335
      %v340 = vpack.c.b16 %v336, %v336
      %v341 = vpack.c.b16 %v337, %v337
      %v342 = vpack.c.b16 %v338, %v338
      %vm347 = vcmask 257024
      %348 = vst.msk [vmem:[%s208] sm:$0xf] %vm347, %v339
      %349 = vst.msk [vmem:[%s208 + $0x4] sm:$0xf] %vm347, %v340
      %350 = vst.msk [vmem:[%s208 + $0x8] sm:$0xf] %vm347, %v341
      %351 = vst.msk [vmem:[%s208 + $0xc] sm:$0xf] %vm347, %v342
      %s352 = smul.u32 4, %s18
      %p353 = scmp.lt.s32.totalorder %s19, 7
      %s354 = scalar_select %p353, %s19, 7
      %p355 = scmp.lt.s32.totalorder %s352, 3
      %s356 = scalar_select %p355, %s352, 3
      %s357 = smul.addr %s354, 4
      %s358 = sadd.s32 %s356, %s357
      %s359 = smul.addr %s358, 4
      %s360 = scalar_lea.vmem %s3, %s359
      // Predicated region
      $region37: #{img_csnn_decoder_v3.4} parent=31 // pred_check
        %p361 = pneg %p116
      $region38: #{img_csnn_decoder_v3.4} parent=31 // pred_check_branch
        %363 = sbr.rel (%p361) target = $region40
      $region39: #{img_csnn_decoder_v3.4} parent=31 // pred_region
        %s364 = smul.u32 4, %s18
      $region40: #{img_csnn_decoder_v3.4} parent=31 // pred_fallthru
        _
    $region32: #{img_csnn_decoder_v3.4} parent=5 // pred_fallthru
      _
    %p365 = scmp.le.s32.totalorder 2, %s9
    // Predicated region
    $region41: #{img_csnn_decoder_v3.4} parent=5 // pred_check
      %p366 = pneg %p365
    $region42: #{img_csnn_decoder_v3.4} parent=5 // pred_check_branch
      %368 = sbr.rel (%p366) target = $region44
    $region43: #{img_csnn_decoder_v3.4} parent=5 // pred_region
      %s369 = ssub.s32 %s9, 2
      // Predicated region
      $region45: #{img_csnn_decoder_v3.4} parent=43 // pred_check
        %p370 = pneg %p122
      $region46: #{img_csnn_decoder_v3.4} parent=43 // pred_check_branch
        %372 = sbr.rel (%p370) target = $region48
      $region47: #{img_csnn_decoder_v3.4} parent=43 // pred_region
        %s373 = smul.u32 4, %s20
        %p374 = scmp.lt.s32.totalorder %s21, 7
        %s375 = scalar_select %p374, %s21, 7
        %p376 = scmp.lt.s32.totalorder %s373, 3
        %s377 = scalar_select %p376, %s373, 3
        %s378 = smul.addr %s375, 4
        %s379 = sadd.s32 %s377, %s378
        %s380 = smul.addr %s379, 4
        %s381 = scalar_lea.vmem %s3, %s380
      $region48: #{img_csnn_decoder_v3.4} parent=43 // pred_fallthru
        _
    $region44: #{img_csnn_decoder_v3.4} parent=5 // pred_fallthru
      _
  $region6: #{img_csnn_decoder_v3.4} parent=0 // loop_footer
    %s13 = sadd.s32 1, %s9
  $region7: #{img_csnn_decoder_v3.4} parent=0 // loop_footer_branch
    %8 = sbr.rel target = $region3
  $region8: #{img_csnn_decoder_v3.4} parent=0 // loop_exit
    _

// kernel: img_csnn_decoder_v3.5
$region0: #{img_csnn_decoder_v3.5}
  #allocation0 [shape = 'u32[]', space=smem, size = 0x4, offset = 0x4, fixed_abs, tag = 'smem constant byte address 0x4 - core index']
  #allocation1 [shape = 'u32[144,128]{1,0:T(1,128)}', space=vmem, size = 0x12000, scoped, tag = 'internal scratch']
  #allocation2 [shape = 'f32[128,4]{1,0:T(8,128)}', space=vmem, size = 0x10000, scoped, tag = 'scratch operand']
  %s0 = inlined_call_operand.vmem [shape: bf16[8,128,8], index: 0, kind: input, shape index: {}]
  %s1 = inlined_call_operand.vmem [shape: bf16[8,4], index: 1, kind: input, shape index: {}]
  %s2 = inlined_call_operand.vmem [shape: f32[1,4], index: 2, kind: input, shape index: {}]
  %s3 = inlined_call_operand.vmem [shape: bf16[8,128,4], index: 3, kind: output, shape index: {}]
  %s4 = sld [smem:[#allocation0]]
  $region49: #{img_csnn_decoder_v3.5} parent=0
    _
  %s6 = ssub.s32 1, %s4
  %s7 = scalar_select 0, %s6, %s4
  loop: start=0, step=1, limit=10
  $region2: #{img_csnn_decoder_v3.5} parent=0 // loop_pre_header
    _
  $region3: #{img_csnn_decoder_v3.5} parent=0 // loop_header
    %s9 = sphi 0, %s13
    %p10 = scmp.ge.s32.totalorder %s9, 10
    %s16 = sphi 0, %s28
    %s17 = sphi 0, %s24
    %s18 = sphi 0, %s16
    %s19 = sphi 0, %s17
    %s20 = sphi 0, %s18
    %s21 = sphi 0, %s19
    %s33 = sphi 0, %s35
    %s36 = sphi 0, %s33
    %s37 = sphi 0, %s36
    %s53 = sphi 0, %s37
    %s57 = sphi 0, %s57
    %s59 = sphi 0, %s57
    %s60 = sphi 0, %s59
    %s74 = sphi 0, %s60
    %s78 = sphi 0, %s78
    %s80 = sphi 0, %s78
    %s81 = sphi 0, %s80
    %s95 = sphi 0, %s81
    %s103 = sphi 0, %s105
    %s106 = sphi 0, %s103
    %s107 = sphi 0, %s106
    %s123 = sphi 0, %s107
  $region4: #{img_csnn_decoder_v3.5} parent=0 // loop_header_branch
    %12 = sbr.rel (%p10) target = $region8
  $region5: #{img_csnn_decoder_v3.5} parent=0 // loop_body
    %s14 = ssub.s32 %s9, 1
    %s15 = ssub.s32 %s9, 2
    %s22 = sadd.s32 1, %s17
    %p23 = scmp.ge.s32.totalorder %s22, 8
    %s24 = scalar_select %p23, 0, %s22
    %s25 = sadd.s32 1, %s16
    %s26 = scalar_select %p23, %s25, %s16
    %p27 = scmp.ge.s32.totalorder %s26, 1
    %s28 = scalar_select %p27, 0, %s26
    %s29 = ssub.s32 %s17, %s24
    %s30 = ssub.s32 %s16, %s28
    %s31 = sor.u32 %s29, %s30
    %p32 = scmp.eq.s32.totalorder %s31, 0
    %s34 = sadd.s32 %s33, 1
    %s35 = scalar_select %p32, %s33, %s34
    %p38 = pneg %p32
    %p39 = scmp.eq.s32.totalorder %s9, 7
    %p40 = por %p38, %p39
    %p41 = scmp.ne.s32.totalorder %s33, %s36
    %p42 = scmp.eq.s32.totalorder %s9, 0
    %p43 = por %p41, %p42
    %p44 = scmp.ne.s32.totalorder %s33, %s36
    %p45 = scmp.eq.s32.totalorder %s14, 7
    %p46 = por %p44, %p45
    %p47 = scmp.ne.s32.totalorder %s36, %s37
    %p48 = scmp.eq.s32.totalorder %s14, 0
    %p49 = por %p47, %p48
    %p50 = scmp.ne.s32.totalorder %s36, %s37
    %p51 = scmp.eq.s32.totalorder %s15, 7
    %p52 = por %p50, %p51
    %p54 = scmp.ne.s32.totalorder %s37, %s53
    %p55 = scmp.eq.s32.totalorder %s15, 0
    %p56 = por %p54, %p55
    %s58 = sadd.s32 %s57, 1
    %p61 = scmp.eq.s32.totalorder %s9, 7
    %p62 = scmp.ne.s32.totalorder %s57, %s59
    %p63 = scmp.eq.s32.totalorder %s9, 0
    %p64 = por %p62, %p63
    %p65 = scmp.ne.s32.totalorder %s57, %s59
    %p66 = scmp.eq.s32.totalorder %s14, 7
    %p67 = por %p65, %p66
    %p68 = scmp.ne.s32.totalorder %s59, %s60
    %p69 = scmp.eq.s32.totalorder %s14, 0
    %p70 = por %p68, %p69
    %p71 = scmp.ne.s32.totalorder %s59, %s60
    %p72 = scmp.eq.s32.totalorder %s15, 7
    %p73 = por %p71, %p72
    %p75 = scmp.ne.s32.totalorder %s60, %s74
    %p76 = scmp.eq.s32.totalorder %s15, 0
    %p77 = por %p75, %p76
    %s79 = sadd.s32 %s78, 1
    %p82 = scmp.eq.s32.totalorder %s9, 7
    %p83 = scmp.ne.s32.totalorder %s78, %s80
    %p84 = scmp.eq.s32.totalorder %s9, 0
    %p85 = por %p83, %p84
    %p86 = scmp.ne.s32.totalorder %s78, %s80
    %p87 = scmp.eq.s32.totalorder %s14, 7
    %p88 = por %p86, %p87
    %p89 = scmp.ne.s32.totalorder %s80, %s81
    %p90 = scmp.eq.s32.totalorder %s14, 0
    %p91 = por %p89, %p90
    %p92 = scmp.ne.s32.totalorder %s80, %s81
    %p93 = scmp.eq.s32.totalorder %s15, 7
    %p94 = por %p92, %p93
    %p96 = scmp.ne.s32.totalorder %s81, %s95
    %p97 = scmp.eq.s32.totalorder %s15, 0
    %p98 = por %p96, %p97
    %s99 = ssub.s32 %s17, %s24
    %s100 = ssub.s32 %s16, %s28
    %s101 = sor.u32 %s99, %s100
    %p102 = scmp.eq.s32.totalorder %s101, 0
    %s104 = sadd.s32 %s103, 1
    %s105 = scalar_select %p102, %s103, %s104
    %p108 = pneg %p102
    %p109 = scmp.eq.s32.totalorder %s9, 7
    %p110 = por %p108, %p109
    %p111 = scmp.ne.s32.totalorder %s103, %s106
    %p112 = scmp.eq.s32.totalorder %s9, 0
    %p113 = por %p111, %p112
    %p114 = scmp.ne.s32.totalorder %s103, %s106
    %p115 = scmp.eq.s32.totalorder %s14, 7
    %p116 = por %p114, %p115
    %p117 = scmp.ne.s32.totalorder %s106, %s107
    %p118 = scmp.eq.s32.totalorder %s14, 0
    %p119 = por %p117, %p118
    %p120 = scmp.ne.s32.totalorder %s106, %s107
    %p121 = scmp.eq.s32.totalorder %s15, 7
    %p122 = por %p120, %p121
    %p124 = scmp.ne.s32.totalorder %s107, %s123
    %p125 = scmp.eq.s32.totalorder %s15, 0
    %p126 = por %p124, %p125
    %p127 = scmp.le.s32.totalorder 1, %s9
    %p128 = scmp.lt.s32.totalorder %s9, 9
    %p129 = pnand %p127, %p128
    %p130 = pneg %p129
    // Predicated region
    $region9: #{img_csnn_decoder_v3.5} parent=5 // pred_check
      _
    $region10: #{img_csnn_decoder_v3.5} parent=5 // pred_check_branch
      %132 = sbr.rel (%p129) target = $region12
    $region11: #{img_csnn_decoder_v3.5} parent=5 // pred_region
      %s133 = ssub.s32 %s9, 1
      // Predicated region
      $region13: #{img_csnn_decoder_v3.5} parent=11 // pred_check
        %p134 = pneg %p70
      $region14: #{img_csnn_decoder_v3.5} parent=11 // pred_check_branch
        %136 = sbr.rel (%p134) target = $region16
      $region15: #{img_csnn_decoder_v3.5} parent=11 // pred_region
        _
      $region16: #{img_csnn_decoder_v3.5} parent=11 // pred_fallthru
        _
      // Predicated region
      $region17: #{img_csnn_decoder_v3.5} parent=11 // pred_check
        %p137 = pneg %p91
      $region18: #{img_csnn_decoder_v3.5} parent=11 // pred_check_branch
        %139 = sbr.rel (%p137) target = $region20
      $region19: #{img_csnn_decoder_v3.5} parent=11 // pred_region
        _
      $region20: #{img_csnn_decoder_v3.5} parent=11 // pred_fallthru
        _
    $region12: #{img_csnn_decoder_v3.5} parent=5 // pred_fallthru
      _
    %p140 = scmp.lt.s32.totalorder %s9, 8
    // Predicated region
    $region21: #{img_csnn_decoder_v3.5} parent=5 // pred_check
      %p141 = pneg %p140
    $region22: #{img_csnn_decoder_v3.5} parent=5 // pred_check_branch
      %143 = sbr.rel (%p141) target = $region24
    $region23: #{img_csnn_decoder_v3.5} parent=5 // pred_region
      // Predicated region
      $region25: #{img_csnn_decoder_v3.5} parent=23 // pred_check
        %p144 = pneg %p43
      $region26: #{img_csnn_decoder_v3.5} parent=23 // pred_check_branch
        %146 = sbr.rel (%p144) target = $region28
      $region27: #{img_csnn_decoder_v3.5} parent=23 // pred_region
        %s147 = smul.u32 16, %s16
        %p148 = scmp.lt.s32.totalorder %s17, 7
        %s149 = scalar_select %p148, %s17, 7
        %p150 = scmp.lt.s32.totalorder %s147, 15
        %s151 = scalar_select %p150, %s147, 15
        %s152 = smul.addr %s149, 16
        %s153 = sadd.s32 %s151, %s152
        %s154 = smul.addr %s153, 4
        %s155 = scalar_lea.vmem %s0, %s154
        %s156 = smul.u32 16, %s16
      $region28: #{img_csnn_decoder_v3.5} parent=23 // pred_fallthru
        _
    $region24: #{img_csnn_decoder_v3.5} parent=5 // pred_fallthru
      _
    %p157 = scmp.le.s32.totalorder 1, %s9
    %p158 = scmp.lt.s32.totalorder %s9, 9
    %p159 = pnand %p157, %p158
    %p160 = pneg %p159
    // Predicated region
    $region29: #{img_csnn_decoder_v3.5} parent=5 // pred_check
      _
    $region30: #{img_csnn_decoder_v3.5} parent=5 // pred_check_branch
      %162 = sbr.rel (%p159) target = $region32
    $region31: #{img_csnn_decoder_v3.5} parent=5 // pred_region
      %s163 = ssub.s32 %s9, 1
      %s164 = smul.u32 16, %s18
      %p165 = scmp.lt.s32.totalorder %s19, 7
      %s166 = scalar_select %p165, %s19, 7
      %p167 = scmp.lt.s32.totalorder %s164, 15
      %s168 = scalar_select %p167, %s164, 15
      %s169 = smul.addr %s166, 16
      %s170 = sadd.s32 %s168, %s169
      %s171 = smul.addr %s170, 4
      %s172 = scalar_lea.vmem %s0, %s171
      %p173 = pneg %p49
      %p174 = pneg %p46
      %p175 = pneg %p70
      %p176 = pneg %p67
      %p177 = pneg %p91
      %p178 = pneg %p88
      %p179 = pneg %p119
      %p180 = pneg %p116
      %s181 = smul.u32 16, %s18
      %p182 = scmp.lt.s32.totalorder %s19, 7
      %s183 = scalar_select %p182, %s19, 7
      %p184 = scmp.lt.s32.totalorder %s181, 15
      %s185 = scalar_select %p184, %s181, 15
      %s186 = smul.addr %s183, 16
      %s187 = sadd.s32 %s185, %s186
      %s188 = smul.addr %s187, 4
      %s189 = scalar_lea.vmem %s3, %s188
      %s190 = smul.u32 16, %s18
      %p191 = scmp.lt.s32.totalorder %s19, 7
      %s192 = scalar_select %p191, %s19, 7
      %p193 = scmp.lt.s32.totalorder %s190, 15
      %s194 = scalar_select %p193, %s190, 15
      %s195 = smul.addr %s192, 16
      %s196 = sadd.s32 %s194, %s195
      %s197 = smul.addr %s196, 4
      %s198 = scalar_lea.vmem %s0, %s197
      %s199 = smul.u32 16, %s18
      %s200 = smul.u32 16, %s18
      %p201 = scmp.lt.s32.totalorder %s19, 7
      %s202 = scalar_select %p201, %s19, 7
      %p203 = scmp.lt.s32.totalorder %s200, 15
      %s204 = scalar_select %p203, %s200, 15
      %s205 = smul.addr %s202, 16
      %s206 = sadd.s32 %s204, %s205
      %s207 = smul.addr %s206, 4
      %s208 = scalar_lea.vmem %s3, %s207
      %s209 = smul.u32 16, %s18
      %p211 = scmp.eq.s32.totalorder %s19, 0
      // Predicated region
      $region33: #{img_csnn_decoder_v3.5} parent=31 // pred_check
        %p212 = pneg %p211
      $region34: #{img_csnn_decoder_v3.5} parent=31 // pred_check_branch
        %214 = sbr.rel (%p212) target = $region36
      $region35: #{img_csnn_decoder_v3.5} parent=31 // pred_region
        %vm215 = vcmask 31744
        %216 = vst.msk [vmem:[#allocation2] sm:$0xff] %vm215, 0.0
        %217 = vst.msk [vmem:[#allocation2 + $0x8] sm:$0xff] %vm215, 0.0
        %218 = vst.msk [vmem:[#allocation2 + $0x10] sm:$0xff] %vm215, 0.0
        %219 = vst.msk [vmem:[#allocation2 + $0x18] sm:$0xff] %vm215, 0.0
        %220 = vst.msk [vmem:[#allocation2 + $0x20] sm:$0xff] %vm215, 0.0
        %221 = vst.msk [vmem:[#allocation2 + $0x28] sm:$0xff] %vm215, 0.0
        %222 = vst.msk [vmem:[#allocation2 + $0x30] sm:$0xff] %vm215, 0.0
        %223 = vst.msk [vmem:[#allocation2 + $0x38] sm:$0xff] %vm215, 0.0
        %224 = vst.msk [vmem:[#allocation2 + $0x40] sm:$0xff] %vm215, 0.0
        %225 = vst.msk [vmem:[#allocation2 + $0x48] sm:$0xff] %vm215, 0.0
        %226 = vst.msk [vmem:[#allocation2 + $0x50] sm:$0xff] %vm215, 0.0
        %227 = vst.msk [vmem:[#allocation2 + $0x58] sm:$0xff] %vm215, 0.0
        %228 = vst.msk [vmem:[#allocation2 + $0x60] sm:$0xff] %vm215, 0.0
        %229 = vst.msk [vmem:[#allocation2 + $0x68] sm:$0xff] %vm215, 0.0
        %230 = vst.msk [vmem:[#allocation2 + $0x70] sm:$0xff] %vm215, 0.0
        %231 = vst.msk [vmem:[#allocation2 + $0x78] sm:$0xff] %vm215, 0.0
      $region36: #{img_csnn_decoder_v3.5} parent=31 // pred_fallthru
        _
      %v232 = vld [vmem:[%s198] sm:$0xf]
      %v233 = vld [vmem:[%s198 + $0x4] sm:$0xf]
      %v234 = vld [vmem:[%s198 + $0x8] sm:$0xf]
      %v235 = vld [vmem:[%s198 + $0xc] sm:$0xf]
      %v236 = vld [vmem:[%s198 + $0x10] sm:$0xf]
      %v237 = vld [vmem:[%s198 + $0x14] sm:$0xf]
      %v238 = vld [vmem:[%s198 + $0x18] sm:$0xf]
      %v239 = vld [vmem:[%s198 + $0x1c] sm:$0xf]
      %v240 = vld [vmem:[%s198 + $0x20] sm:$0xf]
      %v241 = vld [vmem:[%s198 + $0x24] sm:$0xf]
      %v242 = vld [vmem:[%s198 + $0x28] sm:$0xf]
      %v243 = vld [vmem:[%s198 + $0x2c] sm:$0xf]
      %v244 = vld [vmem:[%s198 + $0x30] sm:$0xf]
      %v245 = vld [vmem:[%s198 + $0x34] sm:$0xf]
      %v246 = vld [vmem:[%s198 + $0x38] sm:$0xf]
      %v247 = vld [vmem:[%s198 + $0x3c] sm:$0xf]
      %v248 = vld [vmem:[%s1] sm:$0xf]
      %v249 = vld [vmem:[%s2] sm:$0x1]
      %v251 = vlaneseq
      %v252 = vshrl.u32 %v251, 7
      %v253 = vsub.s32 0, %v252
      %v254 = vrot.slane %v249, %v253
      %v272 = vunpack.c.l.b16 %v232
      %v273 = vunpack.c.l.b16 %v233
      %v274 = vunpack.c.l.b16 %v234
      %v275 = vunpack.c.l.b16 %v235
      %v276 = vunpack.c.l.b16 %v236
      %v277 = vunpack.c.l.b16 %v237
      %v278 = vunpack.c.l.b16 %v238
      %v279 = vunpack.c.l.b16 %v239
      %v280 = vunpack.c.l.b16 %v240
      %v281 = vunpack.c.l.b16 %v241
      %v282 = vunpack.c.l.b16 %v242
      %v283 = vunpack.c.l.b16 %v243
      %v284 = vunpack.c.l.b16 %v244
      %v285 = vunpack.c.l.b16 %v245
      %v286 = vunpack.c.l.b16 %v246
      %v287 = vunpack.c.l.b16 %v247
      %v288 = vpack.c.b16 %v273, %v272
      %v289 = vpack.c.b16 %v275, %v274
      %v290 = vpack.c.b16 %v277, %v276
      %v291 = vpack.c.b16 %v279, %v278
      %v292 = vpack.c.b16 %v281, %v280
      %v293 = vpack.c.b16 %v283, %v282
      %v294 = vpack.c.b16 %v285, %v284
      %v295 = vpack.c.b16 %v287, %v286
      %vm296 = vcmask 64512
      %v298 = vsel %vm296, %v288, 0
      %v301 = vsel %vm296, %v289, 0
      %v304 = vsel %vm296, %v290, 0
      %v307 = vsel %vm296, %v291, 0
      %v310 = vsel %vm296, %v292, 0
      %v313 = vsel %vm296, %v293, 0
      %v316 = vsel %vm296, %v294, 0
      %v319 = vsel %vm296, %v295, 0
      %vm321 = vcmask 1043456
      %v323 = vsel %vm321, %v248, 0
      %325 = vmatprep.subr.bf16.mxu0 0
      %326 = vmatpush1.bf16.msra.mxu0 %v323
      %327 = vmatprep.subr.bf16.mxu0 0
      %328 = vmatpush1.bf16.msra.mxu0 0
      %329 = vmatprep.subr.bf16.mxu0 0
      %330 = vmatpush1.bf16.msra.mxu0 0
      %331 = vmatprep.subr.bf16.mxu0 0
      %332 = vmatpush1.bf16.msra.mxu0 0
      %333 = vmatprep.subr.bf16.mxu0 0
      %334 = vmatpush1.bf16.msra.mxu0 0
      %335 = vmatprep.subr.bf16.mxu0 0
      %336 = vmatpush1.bf16.msra.mxu0 0
      %337 = vmatprep.subr.bf16.mxu0 0
      %338 = vmatpush1.bf16.msra.mxu0 0
      %339 = vmatprep.subr.bf16.mxu0 0
      %340 = vmatpush1.bf16.msra.mxu0 0
      %341 = vmatprep.subr.bf16.mxu0 0
      %342 = vmatpush1.bf16.msra.mxu0 0
      %343 = vmatprep.subr.bf16.mxu0 0
      %344 = vmatpush1.bf16.msra.mxu0 0
      %345 = vmatprep.subr.bf16.mxu0 0
      %346 = vmatpush1.bf16.msra.mxu0 0
      %347 = vmatprep.subr.bf16.mxu0 0
      %348 = vmatpush1.bf16.msra.mxu0 0
      %349 = vmatprep.subr.bf16.mxu0 0
      %350 = vmatpush1.bf16.msra.mxu0 0
      %351 = vmatprep.subr.bf16.mxu0 0
      %352 = vmatpush1.bf16.msra.mxu0 0
      %353 = vmatprep.subr.bf16.mxu0 0
      %354 = vmatpush1.bf16.msra.mxu0 0
      %355 = vmatprep.subr.bf16.mxu0 0
      %356 = vmatpush1.bf16.msra.mxu0 0
      %357 = vmatprep.mubr.bf16.mxu0 0
      %358 = vmatmul.mubr.bf16.gmra.mrb[0].mxu0 %v298
      %v359 = vpop.f32.mrb[0].mxu0
      %v360 = vadd.f32 %v254, %v359
      %v361 = vpop.f32.mrb[0].mxu0
      %v362 = vpop.f32.mrb[0].mxu0
      %v363 = vadd.f32 %v254, %v362
      %v364 = vpop.f32.mrb[0].mxu0
      %365 = vmatprep.mubr.bf16.mxu0 0
      %366 = vmatmul.mubr.bf16.gmra.mrb[0].mxu0 %v301
      %v367 = vpop.f32.mrb[0].mxu0
      %v368 = vadd.f32 %v254, %v367
      %v369 = vpop.f32.mrb[0].mxu0
      %v370 = vpop.f32.mrb[0].mxu0
      %v371 = vadd.f32 %v254, %v370
      %v372 = vpop.f32.mrb[0].mxu0
      %373 = vmatprep.mubr.bf16.mxu0 0
      %374 = vmatmul.mubr.bf16.gmra.mrb[0].mxu0 %v304
      %v375 = vpop.f32.mrb[0].mxu0
      %v376 = vadd.f32 %v254, %v375
      %v377 = vpop.f32.mrb[0].mxu0
      %v378 = vpop.f32.mrb[0].mxu0
      %v379 = vadd.f32 %v254, %v378
      %v380 = vpop.f32.mrb[0].mxu0
      %381 = vmatprep.mubr.bf16.mxu0 0
      %382 = vmatmul.mubr.bf16.gmra.mrb[0].mxu0 %v307
      %v383 = vpop.f32.mrb[0].mxu0
      %v384 = vadd.f32 %v254, %v383
      %v385 = vpop.f32.mrb[0].mxu0
      %v386 = vpop.f32.mrb[0].mxu0
      %v387 = vadd.f32 %v254, %v386
      %v388 = vpop.f32.mrb[0].mxu0
      %389 = vmatprep.mubr.bf16.mxu0 0
      %390 = vmatmul.mubr.bf16.gmra.mrb[0].mxu0 %v310
      %v391 = vpop.f32.mrb[0].mxu0
      %v392 = vadd.f32 %v254, %v391
      %v393 = vpop.f32.mrb[0].mxu0
      %v394 = vpop.f32.mrb[0].mxu0
      %v395 = vadd.f32 %v254, %v394
      %v396 = vpop.f32.mrb[0].mxu0
      %397 = vmatprep.mubr.bf16.mxu0 0
      %398 = vmatmul.mubr.bf16.gmra.mrb[0].mxu0 %v313
      %v399 = vpop.f32.mrb[0].mxu0
      %v400 = vadd.f32 %v254, %v399
      %v401 = vpop.f32.mrb[0].mxu0
      %v402 = vpop.f32.mrb[0].mxu0
      %v403 = vadd.f32 %v254, %v402
      %v404 = vpop.f32.mrb[0].mxu0
      %405 = vmatprep.mubr.bf16.mxu0 0
      %406 = vmatmul.mubr.bf16.gmra.mrb[0].mxu0 %v316
      %v407 = vpop.f32.mrb[0].mxu0
      %v408 = vadd.f32 %v254, %v407
      %v409 = vpop.f32.mrb[0].mxu0
      %v410 = vpop.f32.mrb[0].mxu0
      %v411 = vadd.f32 %v254, %v410
      %v412 = vpop.f32.mrb[0].mxu0
      %413 = vmatprep.mubr.bf16.mxu0 0
      %414 = vmatmul.mubr.bf16.gmra.mrb[0].mxu0 %v319
      %v415 = vpop.f32.mrb[0].mxu0
      %v416 = vadd.f32 %v254, %v415
      %v417 = vpop.f32.mrb[0].mxu0
      %v418 = vpop.f32.mrb[0].mxu0
      %v419 = vadd.f32 %v254, %v418
      %v420 = vpop.f32.mrb[0].mxu0
      %421 = vdwg.mxu0
      %v422 = vld [vmem:[#allocation2] sm:$0xff]
      %v423 = vld [vmem:[#allocation2 + $0x8] sm:$0xff]
      %v424 = vld [vmem:[#allocation2 + $0x10] sm:$0xff]
      %v425 = vld [vmem:[#allocation2 + $0x18] sm:$0xff]
      %v426 = vld [vmem:[#allocation2 + $0x20] sm:$0xff]
      %v427 = vld [vmem:[#allocation2 + $0x28] sm:$0xff]
      %v428 = vld [vmem:[#allocation2 + $0x30] sm:$0xff]
      %v429 = vld [vmem:[#allocation2 + $0x38] sm:$0xff]
      %v430 = vld [vmem:[#allocation2 + $0x40] sm:$0xff]
      %v431 = vld [vmem:[#allocation2 + $0x48] sm:$0xff]
      %v432 = vld [vmem:[#allocation2 + $0x50] sm:$0xff]
      %v433 = vld [vmem:[#allocation2 + $0x58] sm:$0xff]
      %v434 = vld [vmem:[#allocation2 + $0x60] sm:$0xff]
      %v435 = vld [vmem:[#allocation2 + $0x68] sm:$0xff]
      %v436 = vld [vmem:[#allocation2 + $0x70] sm:$0xff]
      %v437 = vld [vmem:[#allocation2 + $0x78] sm:$0xff]
      %v438 = vadd.f32 %v422, %v360
      %v439 = vadd.f32 %v423, %v363
      %v440 = vadd.f32 %v424, %v368
      %v441 = vadd.f32 %v425, %v371
      %v442 = vadd.f32 %v426, %v376
      %v443 = vadd.f32 %v427, %v379
      %v444 = vadd.f32 %v428, %v384
      %v445 = vadd.f32 %v429, %v387
      %v446 = vadd.f32 %v430, %v392
      %v447 = vadd.f32 %v431, %v395
      %v448 = vadd.f32 %v432, %v400
      %v449 = vadd.f32 %v433, %v403
      %v450 = vadd.f32 %v434, %v408
      %v451 = vadd.f32 %v435, %v411
      %v452 = vadd.f32 %v436, %v416
      %v453 = vadd.f32 %v437, %v419
      %vm454 = vcmp.ge.f32.partialorder %v438, 1.0
      %vm455 = vcmp.ge.f32.partialorder %v439, 1.0
      %vm456 = vcmp.ge.f32.partialorder %v440, 1.0
      %vm457 = vcmp.ge.f32.partialorder %v441, 1.0
      %vm458 = vcmp.ge.f32.partialorder %v442, 1.0
      %vm459 = vcmp.ge.f32.partialorder %v443, 1.0
      %vm460 = vcmp.ge.f32.partialorder %v444, 1.0
      %vm461 = vcmp.ge.f32.partialorder %v445, 1.0
      %vm462 = vcmp.ge.f32.partialorder %v446, 1.0
      %vm463 = vcmp.ge.f32.partialorder %v447, 1.0
      %vm464 = vcmp.ge.f32.partialorder %v448, 1.0
      %vm465 = vcmp.ge.f32.partialorder %v449, 1.0
      %vm466 = vcmp.ge.f32.partialorder %v450, 1.0
      %vm467 = vcmp.ge.f32.partialorder %v451, 1.0
      %vm468 = vcmp.ge.f32.partialorder %v452, 1.0
      %vm469 = vcmp.ge.f32.partialorder %v453, 1.0
      %v470 = vsel %vm454, 1, 0
      %v471 = vsel %vm455, 1, 0
      %v472 = vsel %vm456, 1, 0
      %v473 = vsel %vm457, 1, 0
      %v474 = vsel %vm458, 1, 0
      %v475 = vsel %vm459, 1, 0
      %v476 = vsel %vm460, 1, 0
      %v477 = vsel %vm461, 1, 0
      %v478 = vsel %vm462, 1, 0
      %v479 = vsel %vm463, 1, 0
      %v480 = vsel %vm464, 1, 0
      %v481 = vsel %vm465, 1, 0
      %v482 = vsel %vm466, 1, 0
      %v483 = vsel %vm467, 1, 0
      %v484 = vsel %vm468, 1, 0
      %v485 = vsel %vm469, 1, 0
      %v486 = vcvt.s32.f32 %v470
      %v487 = vcvt.s32.f32 %v471
      %v488 = vcvt.s32.f32 %v472
      %v489 = vcvt.s32.f32 %v473
      %v490 = vcvt.s32.f32 %v474
      %v491 = vcvt.s32.f32 %v475
      %v492 = vcvt.s32.f32 %v476
      %v493 = vcvt.s32.f32 %v477
      %v494 = vcvt.s32.f32 %v478
      %v495 = vcvt.s32.f32 %v479
      %v496 = vcvt.s32.f32 %v480
      %v497 = vcvt.s32.f32 %v481
      %v498 = vcvt.s32.f32 %v482
      %v499 = vcvt.s32.f32 %v483
      %v500 = vcvt.s32.f32 %v484
      %v501 = vcvt.s32.f32 %v485
      %v502 = vsub.f32 %v438, %v486
      %v503 = vsub.f32 %v439, %v487
      %v504 = vsub.f32 %v440, %v488
      %v505 = vsub.f32 %v441, %v489
      %v506 = vsub.f32 %v442, %v490
      %v507 = vsub.f32 %v443, %v491
      %v508 = vsub.f32 %v444, %v492
      %v509 = vsub.f32 %v445, %v493
      %v510 = vsub.f32 %v446, %v494
      %v511 = vsub.f32 %v447, %v495
      %v512 = vsub.f32 %v448, %v496
      %v513 = vsub.f32 %v449, %v497
      %v514 = vsub.f32 %v450, %v498
      %v515 = vsub.f32 %v451, %v499
      %v516 = vsub.f32 %v452, %v500
      %v517 = vsub.f32 %v453, %v501
      %vm518 = vcmask 31744
      %519 = vst.msk [vmem:[#allocation2] sm:$0xff] %vm518, %v502
      %520 = vst.msk [vmem:[#allocation2 + $0x8] sm:$0xff] %vm518, %v503
      %521 = vst.msk [vmem:[#allocation2 + $0x10] sm:$0xff] %vm518, %v504
      %522 = vst.msk [vmem:[#allocation2 + $0x18] sm:$0xff] %vm518, %v505
      %523 = vst.msk [vmem:[#allocation2 + $0x20] sm:$0xff] %vm518, %v506
      %524 = vst.msk [vmem:[#allocation2 + $0x28] sm:$0xff] %vm518, %v507
      %525 = vst.msk [vmem:[#allocation2 + $0x30] sm:$0xff] %vm518, %v508
      %526 = vst.msk [vmem:[#allocation2 + $0x38] sm:$0xff] %vm518, %v509
      %527 = vst.msk [vmem:[#allocation2 + $0x40] sm:$0xff] %vm518, %v510
      %528 = vst.msk [vmem:[#allocation2 + $0x48] sm:$0xff] %vm518, %v511
      %529 = vst.msk [vmem:[#allocation2 + $0x50] sm:$0xff] %vm518, %v512
      %530 = vst.msk [vmem:[#allocation2 + $0x58] sm:$0xff] %vm518, %v513
      %531 = vst.msk [vmem:[#allocation2 + $0x60] sm:$0xff] %vm518, %v514
      %532 = vst.msk [vmem:[#allocation2 + $0x68] sm:$0xff] %vm518, %v515
      %533 = vst.msk [vmem:[#allocation2 + $0x70] sm:$0xff] %vm518, %v516
      %534 = vst.msk [vmem:[#allocation2 + $0x78] sm:$0xff] %vm518, %v517
      %v535 = vpack.c.bf16 %v487, %v486
      %v536 = vpack.c.bf16 %v489, %v488
      %v537 = vpack.c.bf16 %v491, %v490
      %v538 = vpack.c.bf16 %v493, %v492
      %v539 = vpack.c.bf16 %v495, %v494
      %v540 = vpack.c.bf16 %v497, %v496
      %v541 = vpack.c.bf16 %v499, %v498
      %v542 = vpack.c.bf16 %v501, %v500
      %v551 = vunpack.c.l.b16 %v535
      %v552 = vunpack.c.h.b16 %v535
      %v553 = vunpack.c.l.b16 %v536
      %v554 = vunpack.c.h.b16 %v536
      %v555 = vunpack.c.l.b16 %v537
      %v556 = vunpack.c.h.b16 %v537
      %v557 = vunpack.c.l.b16 %v538
      %v558 = vunpack.c.h.b16 %v538
      %v559 = vunpack.c.l.b16 %v539
      %v560 = vunpack.c.h.b16 %v539
      %v561 = vunpack.c.l.b16 %v540
      %v562 = vunpack.c.h.b16 %v540
      %v563 = vunpack.c.l.b16 %v541
      %v564 = vunpack.c.h.b16 %v541
      %v565 = vunpack.c.l.b16 %v542
      %v566 = vunpack.c.h.b16 %v542
      %v567 = vpack.c.b16 %v551, %v551
      %v568 = vpack.c.b16 %v552, %v552
      %v569 = vpack.c.b16 %v553, %v553
      %v570 = vpack.c.b16 %v554, %v554
      %v571 = vpack.c.b16 %v555, %v555
      %v572 = vpack.c.b16 %v556, %v556
      %v573 = vpack.c.b16 %v557, %v557
      %v574 = vpack.c.b16 %v558, %v558
      %v575 = vpack.c.b16 %v559, %v559
      %v576 = vpack.c.b16 %v560, %v560
      %v577 = vpack.c.b16 %v561, %v561
      %v578 = vpack.c.b16 %v562, %v562
      %v579 = vpack.c.b16 %v563, %v563
      %v580 = vpack.c.b16 %v564, %v564
      %v581 = vpack.c.b16 %v565, %v565
      %v582 = vpack.c.b16 %v566, %v566
      %vm599 = vcmask 27648
      %600 = vst.msk [vmem:[%s208] sm:$0xf] %vm599, %v567
      %601 = vst.msk [vmem:[%s208 + $0x4] sm:$0xf] %vm599, %v568
      %602 = vst.msk [vmem:[%s208 + $0x8] sm:$0xf] %vm599, %v569
      %603 = vst.msk [vmem:[%s208 + $0xc] sm:$0xf] %vm599, %v570
      %604 = vst.msk [vmem:[%s208 + $0x10] sm:$0xf] %vm599, %v571
      %605 = vst.msk [vmem:[%s208 + $0x14] sm:$0xf] %vm599, %v572
      %606 = vst.msk [vmem:[%s208 + $0x18] sm:$0xf] %vm599, %v573
      %607 = vst.msk [vmem:[%s208 + $0x1c] sm:$0xf] %vm599, %v574
      %608 = vst.msk [vmem:[%s208 + $0x20] sm:$0xf] %vm599, %v575
      %609 = vst.msk [vmem:[%s208 + $0x24] sm:$0xf] %vm599, %v576
      %610 = vst.msk [vmem:[%s208 + $0x28] sm:$0xf] %vm599, %v577
      %611 = vst.msk [vmem:[%s208 + $0x2c] sm:$0xf] %vm599, %v578
      %612 = vst.msk [vmem:[%s208 + $0x30] sm:$0xf] %vm599, %v579
      %613 = vst.msk [vmem:[%s208 + $0x34] sm:$0xf] %vm599, %v580
      %614 = vst.msk [vmem:[%s208 + $0x38] sm:$0xf] %vm599, %v581
      %615 = vst.msk [vmem:[%s208 + $0x3c] sm:$0xf] %vm599, %v582
      %s616 = smul.u32 16, %s18
      %p617 = scmp.lt.s32.totalorder %s19, 7
      %s618 = scalar_select %p617, %s19, 7
      %p619 = scmp.lt.s32.totalorder %s616, 15
      %s620 = scalar_select %p619, %s616, 15
      %s621 = smul.addr %s618, 16
      %s622 = sadd.s32 %s620, %s621
      %s623 = smul.addr %s622, 4
      %s624 = scalar_lea.vmem %s3, %s623
      // Predicated region
      $region37: #{img_csnn_decoder_v3.5} parent=31 // pred_check
        %p625 = pneg %p116
      $region38: #{img_csnn_decoder_v3.5} parent=31 // pred_check_branch
        %627 = sbr.rel (%p625) target = $region40
      $region39: #{img_csnn_decoder_v3.5} parent=31 // pred_region
        %s628 = smul.u32 16, %s18
      $region40: #{img_csnn_decoder_v3.5} parent=31 // pred_fallthru
        _
    $region32: #{img_csnn_decoder_v3.5} parent=5 // pred_fallthru
      _
    %p629 = scmp.le.s32.totalorder 2, %s9
    // Predicated region
    $region41: #{img_csnn_decoder_v3.5} parent=5 // pred_check
      %p630 = pneg %p629
    $region42: #{img_csnn_decoder_v3.5} parent=5 // pred_check_branch
      %632 = sbr.rel (%p630) target = $region44
    $region43: #{img_csnn_decoder_v3.5} parent=5 // pred_region
      %s633 = ssub.s32 %s9, 2
      // Predicated region
      $region45: #{img_csnn_decoder_v3.5} parent=43 // pred_check
        %p634 = pneg %p122
      $region46: #{img_csnn_decoder_v3.5} parent=43 // pred_check_branch
        %636 = sbr.rel (%p634) target = $region48
      $region47: #{img_csnn_decoder_v3.5} parent=43 // pred_region
        %s637 = smul.u32 16, %s20
        %p638 = scmp.lt.s32.totalorder %s21, 7
        %s639 = scalar_select %p638, %s21, 7
        %p640 = scmp.lt.s32.totalorder %s637, 15
        %s641 = scalar_select %p640, %s637, 15
        %s642 = smul.addr %s639, 16
        %s643 = sadd.s32 %s641, %s642
        %s644 = smul.addr %s643, 4
        %s645 = scalar_lea.vmem %s3, %s644
      $region48: #{img_csnn_decoder_v3.5} parent=43 // pred_fallthru
        _
    $region44: #{img_csnn_decoder_v3.5} parent=5 // pred_fallthru
      _
  $region6: #{img_csnn_decoder_v3.5} parent=0 // loop_footer
    %s13 = sadd.s32 1, %s9
  $region7: #{img_csnn_decoder_v3.5} parent=0 // loop_footer_branch
    %8 = sbr.rel target = $region3
  $region8: #{img_csnn_decoder_v3.5} parent=0 // loop_exit
    _

</llo_original>
